<compile_context>
chip_gen: v7x
topology: tpu7x:2x2x1
jax: 0.10.0
libtpu: 0.0.40
codegen_flags: <defaults>
</compile_context>

<pallas_src>
import functools

import numpy as np
import jax
import jax.numpy as jnp
from jax import lax
from jax.experimental import pallas as pl
from jax.experimental.pallas import tpu as pltpu

LN_EPS = 1e-5
DEFAULT = jax.lax.Precision.DEFAULT      # bf16 MXU inputs, f32 accumulation
HIGHEST = jax.lax.Precision.HIGHEST      # used only by the pure-JAX reference
LANE = 128                               # vreg lane width
SUBLANE = 8                              # f32 sublane height
NEG_INF = -1e30


# ------------------------- small helpers -------------------------

def _round_up(x, m):
    return (x + m - 1) // m * m


def _pad_dim(x, axis, target):
    """Zero-pad `axis` of x up to `target` (no-op if already there)."""
    pad = target - x.shape[axis]
    if pad == 0:
        return x
    cfg = [(0, 0)] * x.ndim
    cfg[axis] = (0, pad)
    return jnp.pad(x, cfg)


def _layernorm_padded(x, gamma, beta, n_real):
    """LayerNorm over the last (lane-padded) axis where only the first n_real
    features are real.  Padded features of x / gamma / beta are zero, so the
    output stays exactly zero in the padded lanes."""
    n_pad = x.shape[-1]
    mu = jnp.sum(x, axis=-1, keepdims=True) * (1.0 / n_real)
    d = x - mu
    # sum over real features of (x-mu)^2 == sum over all - (n_pad-n_real)*mu^2
    ssq = jnp.sum(d * d, axis=-1, keepdims=True) - (n_pad - n_real) * (mu * mu)
    var = ssq * (1.0 / n_real)
    return d * lax.rsqrt(var + LN_EPS) * gamma + beta


def _vmem_capacity_bytes():
    """Per-core VMEM capacity; conservative 64 MiB fallback (v7x-sized)."""
    try:
        return int(pltpu.get_tpu_info().vmem_capacity_bytes)
    except Exception:
        return 64 * 1024 * 1024


def _largest_divisor_leq(n, cap):
    cap = max(1, min(n, cap))
    while n % cap:
        cap -= 1
    return cap


def _pick_embed_batch_tile(b, s_pad, pd_pad, d_pad, budget_bytes):
    """Largest divisor of b (capped at b//2 so both v7x TCs get work) whose
    double-buffered blocks + intermediates fit the budget."""
    def need(bt):
        p_in = 2 * bt * s_pad * pd_pad * 2            # bf16 patches, 2 bufs
        o_out = 2 * bt * s_pad * d_pad * 2            # bf16 output, 2 bufs
        inter = bt * s_pad * (pd_pad + 3 * d_pad) * 4 # f32 LN / matmul temps
        weights = 2 * pd_pad * d_pad * 2 + 8 * (pd_pad + d_pad) * 4
        return p_in + o_out + inter + weights
    bt = _largest_divisor_leq(b, b // 2 if b >= 2 else 1)
    while bt > 1 and need(bt) > budget_bytes:
        bt = _largest_divisor_leq(b, bt - 1)
    return bt


def _pick_transformer_batch_tile(b, s_pad, d_pad, w_block_bytes, budget_bytes):
    """Largest divisor of b (capped at b//2 for v7x's 2 TensorCores) whose
    double-buffered x/output blocks, f32 carry, weight block and f32
    intermediates (kqv, scores/exp/attn, out) fit the VMEM budget."""
    def need(bt):
        act = bt * s_pad * d_pad
        x_in = 2 * act * 2                            # bf16 input, 2 bufs
        x_out = 2 * act * 2                           # bf16 output, 2 bufs
        carry = act * 4                               # f32 layer-carry scratch
        kqv = 2 * bt * s_pad * 3 * d_pad * 4          # kqv + k/q/v views (f32)
        scr = 3 * bt * s_pad * s_pad * 4              # scores / exp / attn
        return x_in + x_out + carry + kqv + scr + act * 4 + w_block_bytes
    bt = _largest_divisor_leq(b, b // 2 if b >= 2 else 1)
    while bt > 1 and need(bt) > budget_bytes:
        bt = _largest_divisor_leq(b, bt - 1)
    return bt


# ------------------------- Pallas kernels -------------------------

def _patch_embed_kernel(p_ref, g1_ref, b1_ref, w_ref, bw_ref, g2_ref, b2_ref,
                        clspos_ref, o_ref, *, patch_dim, dim, s_real):
    """Fused: masked LayerNorm(patch_dim) -> Linear(patch_dim, dim) -> masked
    LayerNorm(dim), patch rows already sit at sequence positions 1..n (the
    wrapper padded a zero cls row in front), then add (cls_token|pos) and zero
    the non-patch rows.  The bf16 output of this kernel IS the transformer's
    input block — no inter-kernel cls/pos/pad glue and no extra HBM trip."""
    x = p_ref[...].astype(jnp.float32)                # (bt, S_pad, PD_pad)
    bt, s, pdp = x.shape
    dp = o_ref.shape[-1]

    xn = _layernorm_padded(x, g1_ref[...], b1_ref[...], patch_dim)
    y = jnp.dot(xn.reshape(bt * s, pdp).astype(jnp.bfloat16), w_ref[...],
                preferred_element_type=jnp.float32) + bw_ref[...]
    y = _layernorm_padded(y, g2_ref[...], b2_ref[...], dim).reshape(bt, s, dp)

    # rows 1..n carry patch embeddings; row 0 is the cls slot, tail is padding
    row = lax.broadcasted_iota(jnp.int32, (s, 1), 0)
    valid = jnp.logical_and(row >= 1, row < s_real).astype(jnp.float32)
    o_ref[...] = (y * valid + clspos_ref[...]).astype(o_ref.dtype)


def _transformer_kernel(x_ref, w_ref, o_ref, acc_ref, *, s_real, w_resident):
    """One SimpleAttentionFT layer per depth step; the layer carry lives in an
    f32 VMEM scratch (acc_ref), the bf16 output block is written only on the
    last layer.  The wrapper folded the S**-0.5 scale into Wq, precomputed the
    column-stochastic Wv and stacked [Wk | Wq*scale | Wv'], so each layer is:
        kqv    = x @ W_kqv                       (one MXU matmul over B*S rows)
        scores = query @ key^T + row_mask        (mask kills padded query rows)
        attn   = softmax(scores, axis=query)     (== torch softmax(dim=1))
        x      = 0.5 * (attn @ value - value) + 0.5 * x   # (attn - I) @ v
    """
    l = pl.program_id(1)

    @pl.when(l == 0)
    def _():
        acc_ref[...] = x_ref[...].astype(jnp.float32)

    x = acc_ref[...]                                  # (Bt, S, D) f32
    bt, s, d = x.shape

    w = w_ref[l] if w_resident else w_ref[0]          # (D, 3D) bf16
    kqv = jnp.dot(x.reshape(bt * s, d).astype(jnp.bfloat16), w,
                  preferred_element_type=jnp.float32)  # (Bt*S, 3D) f32
    key = kqv[:, :d].reshape(bt, s, d)
    query = kqv[:, d:2 * d].reshape(bt, s, d)
    value = kqv[:, 2 * d:].reshape(bt, s, d)

    # scores[b, i, j] = query[b, i, :] . key[b, j, :]  (no key transpose)
    scores = jnp.einsum('bid,bjd->bij', query, key, precision=DEFAULT,
                        preferred_element_type=jnp.float32)
    # mask padded query rows out of the column softmax (torch softmax(dim=1))
    row = lax.broadcasted_iota(jnp.int32, (s, 1), 0)
    scores = scores + jnp.where(row < s_real, 0.0, NEG_INF)

    smax = jnp.max(scores, axis=1, keepdims=True)
    se = jnp.exp(scores - smax)
    attn = se * pl.reciprocal(jnp.sum(se, axis=1, keepdims=True), approx=True)

    # (attn - I) @ value == attn @ value - value
    out = jnp.einsum('bij,bjd->bid', attn, value, precision=DEFAULT,
                     preferred_element_type=jnp.float32) - value
    x_new = 0.5 * out + 0.5 * x
    acc_ref[...] = x_new

    @pl.when(l == pl.num_programs(1) - 1)
    def _():
        o_ref[...] = x_new.astype(o_ref.dtype)


# ------------------------- wrapper -------------------------

def simple_vit_ft_forward(img, params, *, patch_size, dim, depth):
    b, c, H, W = img.shape
    ph = pw = patch_size
    h, w = H // ph, W // pw
    n = h * w
    patch_dim = c * ph * pw
    s_real = n + 1

    pd_pad = _round_up(patch_dim, LANE)
    d_pad = _round_up(dim, LANE)
    s_pad = _round_up(s_real, SUBLANE)

    # generation-aware VMEM limits: ~80% of capacity (>=8 MiB headroom on v7x,
    # ~100 MiB on 128 MiB parts); ~45% as the tile-sizing budget.
    vmem_cap = _vmem_capacity_bytes()
    vmem_limit = int(min(vmem_cap * 0.8, vmem_cap - (8 << 20)))
    budget = int(vmem_cap * 0.45)

    # --- einops rearrange + lane/row padding + bf16 cast (layout glue; the
    # leading zero row puts patch j at sequence row j+1 so the kernel's
    # cls/pos epilogue is purely elementwise) ---
    patches = img.reshape(b, c, h, ph, w, pw)
    patches = jnp.transpose(patches, (0, 2, 4, 3, 5, 1)).reshape(b, n, patch_dim)
    patches = _pad_dim(patches, 2, pd_pad)
    patches = jnp.pad(patches, ((0, 0), (1, s_pad - 1 - n), (0, 0)))
    patches = patches.astype(jnp.bfloat16)            # (b, S_pad, PD_pad)

    g1 = _pad_dim(params["ln1_g"], 1, pd_pad)
    b1 = _pad_dim(params["ln1_b"], 1, pd_pad)
    w_emb = _pad_dim(_pad_dim(params["w_embed"], 0, pd_pad), 1, d_pad)
    w_emb = w_emb.astype(jnp.bfloat16)
    b_emb = _pad_dim(params["b_embed"], 1, d_pad)
    g2 = _pad_dim(params["ln2_g"], 1, d_pad)
    b2 = _pad_dim(params["ln2_b"], 1, d_pad)

    # cls token folded into row 0 of the positional embedding (hoisted)
    cls_pos = params["pos_embedding"][0, :s_real]
    cls_pos = cls_pos.at[0].add(params["cls_token"][0, 0])
    cls_pos = _pad_dim(_pad_dim(cls_pos, 0, s_pad), 1, d_pad)   # (S_pad, D_pad)

    # --- fused patch embedding (+cls/pos/pad): batch-tiled "parallel" grid ---
    bt_e = _pick_embed_batch_tile(b, s_pad, pd_pad, d_pad, budget)
    x0 = pl.pallas_call(
        functools.partial(_patch_embed_kernel, patch_dim=patch_dim, dim=dim,
                          s_real=s_real),
        out_shape=jax.ShapeDtypeStruct((b, s_pad, d_pad), jnp.bfloat16),
        grid_spec=pltpu.PrefetchScalarGridSpec(
            num_scalar_prefetch=0,
            grid=(b // bt_e,),
            in_specs=[
                pl.BlockSpec((bt_e, s_pad, pd_pad), lambda i: (i, 0, 0)),
                pl.BlockSpec((1, pd_pad), lambda i: (0, 0)),
                pl.BlockSpec((1, pd_pad), lambda i: (0, 0)),
                pl.BlockSpec((pd_pad, d_pad), lambda i: (0, 0)),
                pl.BlockSpec((1, d_pad), lambda i: (0, 0)),
                pl.BlockSpec((1, d_pad), lambda i: (0, 0)),
                pl.BlockSpec((1, d_pad), lambda i: (0, 0)),
                pl.BlockSpec((s_pad, d_pad), lambda i: (0, 0)),
            ],
            out_specs=pl.BlockSpec((bt_e, s_pad, d_pad), lambda i: (i, 0, 0)),
        ),
        compiler_params=pltpu.CompilerParams(
            dimension_semantics=("parallel",),
            vmem_limit_bytes=vmem_limit),
    )(patches, g1, b1, w_emb, b_emb, g2, b2, cls_pos)

    # --- batch/depth-invariant attention-weight preprocessing (hoisted) ---
    scale = s_real ** -0.5                   # torch: x.size(1) ** -0.5
    wk = _pad_dim(_pad_dim(params["wk"], 1, d_pad), 2, d_pad)
    wq = _pad_dim(_pad_dim(params["wq"] * scale, 1, d_pad), 2, d_pad)
    wv = jnp.swapaxes(jax.nn.softmax(params["wv"], axis=1) / dim, 1, 2)
    wv = _pad_dim(_pad_dim(wv, 1, d_pad), 2, d_pad)
    w_kqv = jnp.concatenate([wk, wq, wv], axis=-1).astype(jnp.bfloat16)

    # whole weight stack resident in VMEM (one DMA total) when it fits;
    # otherwise per-layer blocks (default double-buffered per-layer DMA).
    w_layer_bytes = d_pad * 3 * d_pad * 2
    w_stack_bytes = depth * w_layer_bytes
    w_resident = 2 * w_stack_bytes <= budget // 3
    if w_resident:
        w_spec = pl.BlockSpec((depth, d_pad, 3 * d_pad), lambda i, l: (0, 0, 0))
        w_block_bytes = 2 * w_stack_bytes
    else:
        w_spec = pl.BlockSpec((1, d_pad, 3 * d_pad), lambda i, l: (l, 0, 0))
        w_block_bytes = 2 * w_layer_bytes

    b_tile = _pick_transformer_batch_tile(b, s_pad, d_pad, w_block_bytes, budget)

    x_out = pl.pallas_call(
        functools.partial(_transformer_kernel, s_real=s_real,
                          w_resident=w_resident),
        out_shape=jax.ShapeDtypeStruct((b, s_pad, d_pad), jnp.bfloat16),
        grid_spec=pltpu.PrefetchScalarGridSpec(
            num_scalar_prefetch=0,
            grid=(b // b_tile, depth),       # depth innermost -> layer carry
            in_specs=[
                pl.BlockSpec((b_tile, s_pad, d_pad), lambda i, l: (i, 0, 0)),
                w_spec,
            ],
            out_specs=pl.BlockSpec((b_tile, s_pad, d_pad),
                                   lambda i, l: (i, 0, 0)),
            scratch_shapes=[pltpu.VMEM((b_tile, s_pad, d_pad), jnp.float32)],
        ),
        input_output_aliases={0: 0},         # donate x0's HBM buffer
        compiler_params=pltpu.CompilerParams(
            dimension_semantics=("parallel", "arbitrary"),
            vmem_limit_bytes=vmem_limit),
    )(x0, w_kqv)

    # --- mlp_head on the cls row: tiny (b, dim) @ (dim, classes) matmul is
    # pure launch/DMA overhead as its own pallas_call -> plain JAX ---
    x_cls = x_out[:, 0, :dim].astype(jnp.float32)      # pool='cls'
    logits = jnp.dot(x_cls, params["w_head"], precision=DEFAULT,
                     preferred_element_type=jnp.float32) + params["b_head"]
    return logits


# ------------------------- params & pure-JAX reference -------------------------

def init_params(key, *, patch_dim, dim, depth, num_patches, num_classes):
    ks = jax.random.split(key, 9)

    def uni(k, shape, fan_in):
        bound = 1.0 / np.sqrt(fan_in)
        return jax.random.uniform(k, shape, jnp.float32, -bound, bound)

    return dict(
        ln1_g=jnp.ones((1, patch_dim), jnp.float32),
        ln1_b=jnp.zeros((1, patch_dim), jnp.float32),
        w_embed=uni(ks[0], (patch_dim, dim), patch_dim),     # stored as W.T
        b_embed=uni(ks[1], (1, dim), patch_dim),
        ln2_g=jnp.ones((1, dim), jnp.float32),
        ln2_b=jnp.zeros((1, dim), jnp.float32),
        pos_embedding=jax.random.normal(ks[2], (1, num_patches + 1, dim),
                                        jnp.float32),
        cls_token=jax.random.normal(ks[3], (1, 1, dim), jnp.float32),
        wk=uni(ks[4], (depth, dim, dim), dim),
        wq=uni(ks[5], (depth, dim, dim), dim),
        wv=uni(ks[6], (depth, dim, dim), dim),
        w_head=uni(ks[7], (dim, num_classes), dim),          # stored as W.T
        b_head=uni(ks[8], (1, num_classes), dim),
    )


def reference_forward(img, params, *, patch_size, dim, depth):
    """Pure-JAX f32 (HIGHEST precision) reference matching the PyTorch module."""
    b, c, H, W = img.shape
    ph = pw = patch_size
    h, w = H // ph, W // pw
    n = h * w
    patch_dim = c * ph * pw
    S = n + 1

    x = img.reshape(b, c, h, ph, w, pw)
    x = jnp.transpose(x, (0, 2, 4, 3, 5, 1)).reshape(b, n, patch_dim)

    def ln(v, g, bb):
        mu = jnp.mean(v, axis=-1, keepdims=True)
        var = jnp.mean(jnp.square(v - mu), axis=-1, keepdims=True)
        return (v - mu) * lax.rsqrt(var + LN_EPS) * g + bb

    x = ln(x, params["ln1_g"], params["ln1_b"])
    x = jnp.einsum("bnp,pd->bnd", x, params["w_embed"],
                   precision=HIGHEST) + params["b_embed"]
    x = ln(x, params["ln2_g"], params["ln2_b"])

    cls_tok = jnp.broadcast_to(params["cls_token"], (b, 1, dim))
    x = jnp.concatenate([cls_tok, x], axis=1) + params["pos_embedding"][:, :S]

    scale = S ** -0.5
    eye = jnp.eye(S, dtype=jnp.float32)
    for l in range(depth):
        wk, wq = params["wk"][l], params["wq"][l]
        wv = (jax.nn.softmax(params["wv"][l], axis=0) / dim).T
        key = jnp.einsum("bnd,de->bne", x, wk, precision=HIGHEST)
        query = jnp.einsum("bnd,de->bne", x, wq, precision=HIGHEST)
        value = jnp.einsum("bnd,de->bne", x, wv, precision=HIGHEST)
        scores = jnp.einsum("bid,bjd->bij", query, key, precision=HIGHEST) * scale
        attn = jax.nn.softmax(scores, axis=1) - eye
        out = jnp.einsum("bij,bjd->bid", attn, value, precision=HIGHEST)
        x = 0.5 * out + 0.5 * x

    x = x[:, 0]
    return jnp.einsum("bd,dc->bc", x, params["w_head"],
                      precision=HIGHEST) + params["b_head"]


# ------------------------- main -------------------------

if __name__ == "__main__":
    image_size = 16
    patch_size = 4
    channels = 4
    dim = 32
    depth = 2
    num_classes = 10
    batch = 2

    num_patches = (image_size // patch_size) ** 2
    patch_dim = channels * patch_size * patch_size

    key = jax.random.PRNGKey(0)
    k_img, k_params = jax.random.split(key)
    img = jax.random.normal(k_img, (batch, channels, image_size, image_size),
                            jnp.float32)
    params = init_params(k_params, patch_dim=patch_dim, dim=dim, depth=depth,
                         num_patches=num_patches, num_classes=num_classes)

    fwd = jax.jit(functools.partial(simple_vit_ft_forward,
                                    patch_size=patch_size, dim=dim, depth=depth))
    out = jax.block_until_ready(fwd(img, params))

    ref = jax.block_until_ready(
        reference_forward(img, params, patch_size=patch_size, dim=dim,
                          depth=depth))

    # Kernel matmuls use bf16 MXU inputs (Precision.DEFAULT) and a bf16
    # activation handoff with an f32 layer carry; compare against the f32
    # (HIGHEST) reference at bf16-level tolerance.
    np.testing.assert_allclose(np.asarray(out), np.asarray(ref),
                               rtol=2e-2, atol=2e-2)
    print("KERNEL_OK")
</pallas_src>

<mosaic_0001>
module attributes {stable_mosaic.version = 11 : i64} {
  func.func @_patch_embed_kernel(%arg0: i32, %arg1: memref<1x24x128xbf16, #tpu.memory_space<vmem>>, %arg2: memref<1x128xf32, #tpu.memory_space<vmem>>, %arg3: memref<1x128xf32, #tpu.memory_space<vmem>>, %arg4: memref<128x128xbf16, #tpu.memory_space<vmem>>, %arg5: memref<1x128xf32, #tpu.memory_space<vmem>>, %arg6: memref<1x128xf32, #tpu.memory_space<vmem>>, %arg7: memref<1x128xf32, #tpu.memory_space<vmem>>, %arg8: memref<24x128xf32, #tpu.memory_space<vmem>>, %arg9: memref<1x24x128xbf16, #tpu.memory_space<vmem>>) attributes {dimension_semantics = [#tpu.dimension_semantics<parallel>], iteration_bounds = array<i64: 2>, scalar_prefetch = 0 : i64, scratch_operands = 0 : i64, tpu.core_type = #tpu.core_type<tc>, window_params = [{transform_indices = @transform_0, window_bounds = array<i64: 1, 24, 128>}, {pipeline_mode = #tpu.pipeline_mode<synchronous>, transform_indices = @transform_1, window_bounds = array<i64: 1, 128>}, {pipeline_mode = #tpu.pipeline_mode<synchronous>, transform_indices = @transform_2, window_bounds = array<i64: 1, 128>}, {pipeline_mode = #tpu.pipeline_mode<synchronous>, transform_indices = @transform_3, window_bounds = array<i64: 128, 128>}, {pipeline_mode = #tpu.pipeline_mode<synchronous>, transform_indices = @transform_4, window_bounds = array<i64: 1, 128>}, {pipeline_mode = #tpu.pipeline_mode<synchronous>, transform_indices = @transform_5, window_bounds = array<i64: 1, 128>}, {pipeline_mode = #tpu.pipeline_mode<synchronous>, transform_indices = @transform_6, window_bounds = array<i64: 1, 128>}, {pipeline_mode = #tpu.pipeline_mode<synchronous>, transform_indices = @transform_7, window_bounds = array<i64: 24, 128>}, {transform_indices = @transform_8, window_bounds = array<i64: 1, 24, 128>}]} {
    %c0 = arith.constant 0 : index
    %c0_0 = arith.constant 0 : index
    %c0_1 = arith.constant 0 : index
    %0 = vector.load %arg1[%c0, %c0_0, %c0_1] : memref<1x24x128xbf16, #tpu.memory_space<vmem>>, vector<1x24x128xbf16>
    %1 = arith.extf %0 : vector<1x24x128xbf16> to vector<1x24x128xf32>
    %c0_2 = arith.constant 0 : index
    %c0_3 = arith.constant 0 : index
    %2 = vector.load %arg2[%c0_2, %c0_3] : memref<1x128xf32, #tpu.memory_space<vmem>>, vector<1x128xf32>
    %c0_4 = arith.constant 0 : index
    %c0_5 = arith.constant 0 : index
    %3 = vector.load %arg3[%c0_4, %c0_5] : memref<1x128xf32, #tpu.memory_space<vmem>>, vector<1x128xf32>
    %cst = arith.constant dense<0.000000e+00> : vector<1x24xf32>
    %4 = vector.multi_reduction <add>, %1, %cst [2] : vector<1x24x128xf32> to vector<1x24xf32>
    %5 = vector.shape_cast %4 : vector<1x24xf32> to vector<1x24x1xf32>
    %cst_6 = arith.constant 1.562500e-02 : f32
    %6 = vector.broadcast %cst_6 : f32 to vector<1x24x1xf32>
    %7 = arith.mulf %5, %6 : vector<1x24x1xf32>
    %8 = vector.broadcast %7 : vector<1x24x1xf32> to vector<1x24x128xf32>
    %9 = arith.subf %1, %8 : vector<1x24x128xf32>
    %10 = arith.mulf %9, %9 : vector<1x24x128xf32>
    %cst_7 = arith.constant dense<0.000000e+00> : vector<1x24xf32>
    %11 = vector.multi_reduction <add>, %10, %cst_7 [2] : vector<1x24x128xf32> to vector<1x24xf32>
    %12 = vector.shape_cast %11 : vector<1x24xf32> to vector<1x24x1xf32>
    %13 = arith.mulf %7, %7 : vector<1x24x1xf32>
    %cst_8 = arith.constant 6.400000e+01 : f32
    %14 = vector.broadcast %cst_8 : f32 to vector<1x24x1xf32>
    %15 = arith.mulf %14, %13 : vector<1x24x1xf32>
    %16 = arith.subf %12, %15 : vector<1x24x1xf32>
    %cst_9 = arith.constant 1.562500e-02 : f32
    %17 = vector.broadcast %cst_9 : f32 to vector<1x24x1xf32>
    %18 = arith.mulf %16, %17 : vector<1x24x1xf32>
    %cst_10 = arith.constant 9.99999974E-6 : f32
    %19 = vector.broadcast %cst_10 : f32 to vector<1x24x1xf32>
    %20 = arith.addf %18, %19 : vector<1x24x1xf32>
    %21 = math.rsqrt %20 : vector<1x24x1xf32>
    %22 = vector.broadcast %21 : vector<1x24x1xf32> to vector<1x24x128xf32>
    %23 = arith.mulf %9, %22 : vector<1x24x128xf32>
    %24 = vector.shape_cast %2 : vector<1x128xf32> to vector<1x1x128xf32>
    %25 = vector.broadcast %24 : vector<1x1x128xf32> to vector<1x24x128xf32>
    %26 = arith.mulf %23, %25 : vector<1x24x128xf32>
    %27 = vector.shape_cast %3 : vector<1x128xf32> to vector<1x1x128xf32>
    %28 = vector.broadcast %27 : vector<1x1x128xf32> to vector<1x24x128xf32>
    %29 = arith.addf %26, %28 : vector<1x24x128xf32>
    %30 = vector.shape_cast %29 : vector<1x24x128xf32> to vector<24x128xf32>
    %31 = arith.truncf %30 : vector<24x128xf32> to vector<24x128xbf16>
    %c0_11 = arith.constant 0 : index
    %c0_12 = arith.constant 0 : index
    %32 = vector.load %arg4[%c0_11, %c0_12] : memref<128x128xbf16, #tpu.memory_space<vmem>>, vector<128x128xbf16>
    %cst_13 = arith.constant dense<0.000000e+00> : vector<24x128xf32>
    %33 = tpu.matmul %31, %32, %cst_13 {dimension_numbers = #tpu.dot_dimension_numbers<[1], [0], [0], [1], [0, 0, 1, 1], [], []>} : vector<24x128xbf16>, vector<128x128xbf16>, vector<24x128xf32> -> vector<24x128xf32>
    %c0_14 = arith.constant 0 : index
    %c0_15 = arith.constant 0 : index
    %34 = vector.load %arg5[%c0_14, %c0_15] : memref<1x128xf32, #tpu.memory_space<vmem>>, vector<1x128xf32>
    %35 = vector.broadcast %34 : vector<1x128xf32> to vector<24x128xf32>
    %36 = arith.addf %33, %35 : vector<24x128xf32>
    %c0_16 = arith.constant 0 : index
    %c0_17 = arith.constant 0 : index
    %37 = vector.load %arg6[%c0_16, %c0_17] : memref<1x128xf32, #tpu.memory_space<vmem>>, vector<1x128xf32>
    %c0_18 = arith.constant 0 : index
    %c0_19 = arith.constant 0 : index
    %38 = vector.load %arg7[%c0_18, %c0_19] : memref<1x128xf32, #tpu.memory_space<vmem>>, vector<1x128xf32>
    %cst_20 = arith.constant dense<0.000000e+00> : vector<24xf32>
    %39 = vector.multi_reduction <add>, %36, %cst_20 [1] : vector<24x128xf32> to vector<24xf32>
    %40 = vector.shape_cast %39 : vector<24xf32> to vector<24x1xf32>
    %cst_21 = arith.constant 3.125000e-02 : f32
    %41 = vector.broadcast %cst_21 : f32 to vector<24x1xf32>
    %42 = arith.mulf %40, %41 : vector<24x1xf32>
    %43 = vector.broadcast %42 : vector<24x1xf32> to vector<24x128xf32>
    %44 = arith.subf %36, %43 : vector<24x128xf32>
    %45 = arith.mulf %44, %44 : vector<24x128xf32>
    %cst_22 = arith.constant dense<0.000000e+00> : vector<24xf32>
    %46 = vector.multi_reduction <add>, %45, %cst_22 [1] : vector<24x128xf32> to vector<24xf32>
    %47 = vector.shape_cast %46 : vector<24xf32> to vector<24x1xf32>
    %48 = arith.mulf %42, %42 : vector<24x1xf32>
    %cst_23 = arith.constant 9.600000e+01 : f32
    %49 = vector.broadcast %cst_23 : f32 to vector<24x1xf32>
    %50 = arith.mulf %49, %48 : vector<24x1xf32>
    %51 = arith.subf %47, %50 : vector<24x1xf32>
    %cst_24 = arith.constant 3.125000e-02 : f32
    %52 = vector.broadcast %cst_24 : f32 to vector<24x1xf32>
    %53 = arith.mulf %51, %52 : vector<24x1xf32>
    %cst_25 = arith.constant 9.99999974E-6 : f32
    %54 = vector.broadcast %cst_25 : f32 to vector<24x1xf32>
    %55 = arith.addf %53, %54 : vector<24x1xf32>
    %56 = math.rsqrt %55 : vector<24x1xf32>
    %57 = vector.broadcast %56 : vector<24x1xf32> to vector<24x128xf32>
    %58 = arith.mulf %44, %57 : vector<24x128xf32>
    %59 = vector.broadcast %37 : vector<1x128xf32> to vector<24x128xf32>
    %60 = arith.mulf %58, %59 : vector<24x128xf32>
    %61 = vector.broadcast %38 : vector<1x128xf32> to vector<24x128xf32>
    %62 = arith.addf %60, %61 : vector<24x128xf32>
    %63 = vector.shape_cast %62 : vector<24x128xf32> to vector<1x24x128xf32>
    %64 = tpu.iota {dimensions = array<i32: 0>} : vector<24x1xi32>
    %c1_i32 = arith.constant 1 : i32
    %65 = vector.broadcast %c1_i32 : i32 to vector<24x1xi32>
    %66 = arith.cmpi sge, %64, %65 : vector<24x1xi32>
    %c17_i32 = arith.constant 17 : i32
    %67 = vector.broadcast %c17_i32 : i32 to vector<24x1xi32>
    %68 = arith.cmpi slt, %64, %67 : vector<24x1xi32>
    %69 = arith.andi %66, %68 : vector<24x1xi1>
    %70 = arith.extui %69 : vector<24x1xi1> to vector<24x1xi32>
    %71 = arith.sitofp %70 : vector<24x1xi32> to vector<24x1xf32>
    %72 = vector.shape_cast %71 : vector<24x1xf32> to vector<1x24x1xf32>
    %73 = vector.broadcast %72 : vector<1x24x1xf32> to vector<1x24x128xf32>
    %74 = arith.mulf %63, %73 : vector<1x24x128xf32>
    %c0_26 = arith.constant 0 : index
    %c0_27 = arith.constant 0 : index
    %75 = vector.load %arg8[%c0_26, %c0_27] : memref<24x128xf32, #tpu.memory_space<vmem>>, vector<24x128xf32>
    %76 = vector.shape_cast %75 : vector<24x128xf32> to vector<1x24x128xf32>
    %77 = arith.addf %74, %76 : vector<1x24x128xf32>
    %78 = arith.truncf %77 : vector<1x24x128xf32> to vector<1x24x128xbf16>
    %c0_28 = arith.constant 0 : index
    %c0_29 = arith.constant 0 : index
    %c0_30 = arith.constant 0 : index
    %79 = vector.load %arg9[%c0_28, %c0_29, %c0_30] : memref<1x24x128xbf16, #tpu.memory_space<vmem>>, vector<1x24x128xbf16>
    tpu.vector_store %arg9[%c0_28, %c0_29, %c0_30], %78 {strides = array<i32>} : memref<1x24x128xbf16, #tpu.memory_space<vmem>>, vector<1x24x128xbf16>,
    return
  }
  func.func @transform_0(%arg0: i32) -> (i32, i32, i32) {
    %c0_i32 = arith.constant 0 : i32
    %c0_i32_0 = arith.constant 0 : i32
    %c0_i32_1 = arith.constant 0 : i32
    return %arg0, %c0_i32, %c0_i32_0 : i32, i32, i32
  }
  func.func @transform_1(%arg0: i32) -> (i32, i32) {
    %c0_i32 = arith.constant 0 : i32
    %c0_i32_0 = arith.constant 0 : i32
    %c0_i32_1 = arith.constant 0 : i32
    return %c0_i32, %c0_i32_0 : i32, i32
  }
  func.func @transform_2(%arg0: i32) -> (i32, i32) {
    %c0_i32 = arith.constant 0 : i32
    %c0_i32_0 = arith.constant 0 : i32
    %c0_i32_1 = arith.constant 0 : i32
    return %c0_i32, %c0_i32_0 : i32, i32
  }
  func.func @transform_3(%arg0: i32) -> (i32, i32) {
    %c0_i32 = arith.constant 0 : i32
    %c0_i32_0 = arith.constant 0 : i32
    %c0_i32_1 = arith.constant 0 : i32
    return %c0_i32, %c0_i32_0 : i32, i32
  }
  func.func @transform_4(%arg0: i32) -> (i32, i32) {
    %c0_i32 = arith.constant 0 : i32
    %c0_i32_0 = arith.constant 0 : i32
    %c0_i32_1 = arith.constant 0 : i32
    return %c0_i32, %c0_i32_0 : i32, i32
  }
  func.func @transform_5(%arg0: i32) -> (i32, i32) {
    %c0_i32 = arith.constant 0 : i32
    %c0_i32_0 = arith.constant 0 : i32
    %c0_i32_1 = arith.constant 0 : i32
    return %c0_i32, %c0_i32_0 : i32, i32
  }
  func.func @transform_6(%arg0: i32) -> (i32, i32) {
    %c0_i32 = arith.constant 0 : i32
    %c0_i32_0 = arith.constant 0 : i32
    %c0_i32_1 = arith.constant 0 : i32
    return %c0_i32, %c0_i32_0 : i32, i32
  }
  func.func @transform_7(%arg0: i32) -> (i32, i32) {
    %c0_i32 = arith.constant 0 : i32
    %c0_i32_0 = arith.constant 0 : i32
    %c0_i32_1 = arith.constant 0 : i32
    return %c0_i32, %c0_i32_0 : i32, i32
  }
  func.func @transform_8(%arg0: i32) -> (i32, i32, i32) {
    %c0_i32 = arith.constant 0 : i32
    %c0_i32_0 = arith.constant 0 : i32
    %c0_i32_1 = arith.constant 0 : i32
    return %arg0, %c0_i32, %c0_i32_0 : i32, i32, i32
  }
}

module attributes {stable_mosaic.version = 11 : i64} {
  func.func @_transformer_kernel(%arg0: i32, %arg1: i32, %arg2: memref<1x24x128xbf16, #tpu.memory_space<vmem>>, %arg3: memref<2x128x384xbf16, #tpu.memory_space<vmem>>, %arg4: memref<1x24x128xbf16, #tpu.memory_space<vmem>>, %arg5: memref<1x24x128xf32, #tpu.memory_space<vmem>>) attributes {dimension_semantics = [#tpu.dimension_semantics<parallel>, #tpu.dimension_semantics<arbitrary>], iteration_bounds = array<i64: 2, 2>, scalar_prefetch = 0 : i64, scratch_operands = 1 : i64, tpu.core_type = #tpu.core_type<tc>, window_params = [{transform_indices = @transform_0, window_bounds = array<i64: 1, 24, 128>}, {pipeline_mode = #tpu.pipeline_mode<synchronous>, transform_indices = @transform_1, window_bounds = array<i64: 2, 128, 384>}, {transform_indices = @transform_2, window_bounds = array<i64: 1, 24, 128>}]} {
    %c0_i32 = arith.constant 0 : i32
    %0 = arith.cmpi eq, %arg1, %c0_i32 : i32
    %1 = arith.extui %0 : i1 to i32
    %c0_i32_0 = arith.constant 0 : i32
    %2 = arith.cmpi ne, %1, %c0_i32_0 : i32
    scf.if %2 {
      %c0_17 = arith.constant 0 : index
      %c0_18 = arith.constant 0 : index
      %c0_19 = arith.constant 0 : index
      %47 = vector.load %arg2[%c0_17, %c0_18, %c0_19] : memref<1x24x128xbf16, #tpu.memory_space<vmem>>, vector<1x24x128xbf16>
      %48 = arith.extf %47 : vector<1x24x128xbf16> to vector<1x24x128xf32>
      %c0_20 = arith.constant 0 : index
      %c0_21 = arith.constant 0 : index
      %c0_22 = arith.constant 0 : index
      %49 = vector.load %arg5[%c0_20, %c0_21, %c0_22] : memref<1x24x128xf32, #tpu.memory_space<vmem>>, vector<1x24x128xf32>
      tpu.vector_store %arg5[%c0_20, %c0_21, %c0_22], %48 {strides = array<i32>} : memref<1x24x128xf32, #tpu.memory_space<vmem>>, vector<1x24x128xf32>,
    } else {
    }
    %c0 = arith.constant 0 : index
    %c0_1 = arith.constant 0 : index
    %c0_2 = arith.constant 0 : index
    %3 = vector.load %arg5[%c0, %c0_1, %c0_2] : memref<1x24x128xf32, #tpu.memory_space<vmem>>, vector<1x24x128xf32>
    %4 = arith.index_cast %arg1 : i32 to index
    %c0_3 = arith.constant 0 : index
    %c0_4 = arith.constant 0 : index
    %5 = vector.load %arg3[%4, %c0_3, %c0_4] : memref<2x128x384xbf16, #tpu.memory_space<vmem>>, vector<1x128x384xbf16>
    %6 = vector.shape_cast %5 : vector<1x128x384xbf16> to vector<128x384xbf16>
    %7 = vector.shape_cast %3 : vector<1x24x128xf32> to vector<24x128xf32>
    %8 = arith.truncf %7 : vector<24x128xf32> to vector<24x128xbf16>
    %cst = arith.constant dense<0.000000e+00> : vector<24x384xf32>
    %9 = tpu.matmul %8, %6, %cst {dimension_numbers = #tpu.dot_dimension_numbers<[1], [0], [0], [1], [0, 0, 1, 1], [], []>} : vector<24x128xbf16>, vector<128x384xbf16>, vector<24x384xf32> -> vector<24x384xf32>
    %10 = vector.extract_strided_slice %9 {offsets = [0, 0], sizes = [24, 128], strides = [1, 1]} : vector<24x384xf32> to vector<24x128xf32>
    %11 = vector.shape_cast %10 : vector<24x128xf32> to vector<1x24x128xf32>
    %12 = vector.extract_strided_slice %9 {offsets = [0, 128], sizes = [24, 128], strides = [1, 1]} : vector<24x384xf32> to vector<24x128xf32>
    %13 = vector.shape_cast %12 : vector<24x128xf32> to vector<1x24x128xf32>
    %14 = vector.extract_strided_slice %9 {offsets = [0, 256], sizes = [24, 128], strides = [1, 1]} : vector<24x384xf32> to vector<24x128xf32>
    %15 = vector.shape_cast %14 : vector<24x128xf32> to vector<1x24x128xf32>
    "tpu.trace_start"() <{level = 10 : i32, message = "bid,bjd->bij"}> : () -> ()
    %cst_5 = arith.constant dense<0.000000e+00> : vector<1x24x24xf32>
    %16 = tpu.matmul %13, %11, %cst_5 {dimension_numbers = #tpu.dot_dimension_numbers<[2], [2], [1], [1], [0, 0, 0, 1, 1, 1], [0], [0]>} : vector<1x24x128xf32>, vector<1x24x128xf32>, vector<1x24x24xf32> -> vector<1x24x24xf32>
    "tpu.trace_stop"() : () -> ()
    %17 = tpu.iota {dimensions = array<i32: 0>} : vector<24x1xi32>
    %c17_i32 = arith.constant 17 : i32
    %18 = vector.broadcast %c17_i32 : i32 to vector<24x1xi32>
    %19 = arith.cmpi slt, %17, %18 : vector<24x1xi32>
    %cst_6 = arith.constant 0.000000e+00 : f32
    %cst_7 = arith.constant -1.000000e+30 : f32
    %20 = vector.broadcast %cst_6 : f32 to vector<24x1xf32>
    %21 = vector.broadcast %cst_7 : f32 to vector<24x1xf32>
    %22 = arith.select %19, %20, %21 : vector<24x1xi1>, vector<24x1xf32>
    %23 = vector.shape_cast %22 : vector<24x1xf32> to vector<1x24x1xf32>
    %24 = vector.broadcast %23 : vector<1x24x1xf32> to vector<1x24x24xf32>
    %25 = arith.addf %16, %24 : vector<1x24x24xf32>
    %cst_8 = arith.constant dense<0xFF800000> : vector<1x24xf32>
    %26 = vector.multi_reduction <maximumf>, %25, %cst_8 [1] : vector<1x24x24xf32> to vector<1x24xf32>
    %27 = vector.shape_cast %26 : vector<1x24xf32> to vector<1x1x24xf32>
    %28 = vector.broadcast %27 : vector<1x1x24xf32> to vector<1x24x24xf32>
    %29 = arith.subf %25, %28 : vector<1x24x24xf32>
    %30 = math.exp %29 : vector<1x24x24xf32>
    %cst_9 = arith.constant dense<0.000000e+00> : vector<1x24xf32>
    %31 = vector.multi_reduction <add>, %30, %cst_9 [1] : vector<1x24x24xf32> to vector<1x24xf32>
    %32 = vector.shape_cast %31 : vector<1x24xf32> to vector<1x1x24xf32>
    %33 = tpu.reciprocal %32 {approx = true} : vector<1x1x24xf32> -> vector<1x1x24xf32>
    %34 = vector.broadcast %33 : vector<1x1x24xf32> to vector<1x24x24xf32>
    %35 = arith.mulf %30, %34 : vector<1x24x24xf32>
    "tpu.trace_start"() <{level = 10 : i32, message = "bij,bjd->bid"}> : () -> ()
    %cst_10 = arith.constant dense<0.000000e+00> : vector<1x24x128xf32>
    %36 = tpu.matmul %35, %15, %cst_10 {dimension_numbers = #tpu.dot_dimension_numbers<[2], [1], [1], [2], [0, 0, 0, 1, 1, 2], [0], [0]>} : vector<1x24x24xf32>, vector<1x24x128xf32>, vector<1x24x128xf32> -> vector<1x24x128xf32>
    "tpu.trace_stop"() : () -> ()
    %37 = arith.subf %36, %15 : vector<1x24x128xf32>
    %cst_11 = arith.constant 5.000000e-01 : f32
    %38 = vector.broadcast %cst_11 : f32 to vector<1x24x128xf32>
    %39 = arith.mulf %38, %37 : vector<1x24x128xf32>
    %cst_12 = arith.constant 5.000000e-01 : f32
    %40 = vector.broadcast %cst_12 : f32 to vector<1x24x128xf32>
    %41 = arith.mulf %40, %3 : vector<1x24x128xf32>
    %42 = arith.addf %39, %41 : vector<1x24x128xf32>
    %c0_13 = arith.constant 0 : index
    %c0_14 = arith.constant 0 : index
    %c0_15 = arith.constant 0 : index
    %43 = vector.load %arg5[%c0_13, %c0_14, %c0_15] : memref<1x24x128xf32, #tpu.memory_space<vmem>>, vector<1x24x128xf32>
    tpu.vector_store %arg5[%c0_13, %c0_14, %c0_15], %42 {strides = array<i32>} : memref<1x24x128xf32, #tpu.memory_space<vmem>>, vector<1x24x128xf32>,
    %c1_i32 = arith.constant 1 : i32
    %44 = arith.cmpi eq, %arg1, %c1_i32 : i32
    %45 = arith.extui %44 : i1 to i32
    %c0_i32_16 = arith.constant 0 : i32
    %46 = arith.cmpi ne, %45, %c0_i32_16 : i32
    scf.if %46 {
      %47 = arith.truncf %42 : vector<1x24x128xf32> to vector<1x24x128xbf16>
      %c0_17 = arith.constant 0 : index
      %c0_18 = arith.constant 0 : index
      %c0_19 = arith.constant 0 : index
      %48 = vector.load %arg4[%c0_17, %c0_18, %c0_19] : memref<1x24x128xbf16, #tpu.memory_space<vmem>>, vector<1x24x128xbf16>
      tpu.vector_store %arg4[%c0_17, %c0_18, %c0_19], %47 {strides = array<i32>} : memref<1x24x128xbf16, #tpu.memory_space<vmem>>, vector<1x24x128xbf16>,
    } else {
    }
    return
  }
  func.func @transform_0(%arg0: i32, %arg1: i32) -> (i32, i32, i32) {
    %c0_i32 = arith.constant 0 : i32
    %c0_i32_0 = arith.constant 0 : i32
    %c0_i32_1 = arith.constant 0 : i32
    return %arg0, %c0_i32, %c0_i32_0 : i32, i32, i32
  }
  func.func @transform_1(%arg0: i32, %arg1: i32) -> (i32, i32, i32) {
    %c0_i32 = arith.constant 0 : i32
    %c0_i32_0 = arith.constant 0 : i32
    %c0_i32_1 = arith.constant 0 : i32
    %c0_i32_2 = arith.constant 0 : i32
    return %c0_i32, %c0_i32_0, %c0_i32_1 : i32, i32, i32
  }
  func.func @transform_2(%arg0: i32, %arg1: i32) -> (i32, i32, i32) {
    %c0_i32 = arith.constant 0 : i32
    %c0_i32_0 = arith.constant 0 : i32
    %c0_i32_1 = arith.constant 0 : i32
    return %arg0, %c0_i32, %c0_i32_0 : i32, i32, i32
  }
}

</mosaic_0001>

<llo_original>
// kernel: simple_vit_ft_forward.2
$region0: #{simple_vit_ft_forward.2}
  #allocation0 [shape = 'u32[]', space=smem, size = 0x4, offset = 0x4, fixed_abs, tag = 'smem constant byte address 0x4 - core index']
  #allocation1 [shape = 'u32[144,128]{1,0:T(1,128)}', space=vmem, size = 0x12000, scoped, tag = 'internal scratch']
  %s0 = inlined_call_operand.vmem [shape: bf16[2,24,128], index: 0, kind: input, shape index: {}]
  %s1 = inlined_call_operand.vmem [shape: f32[1,128], index: 1, kind: input, shape index: {}]
  %s2 = inlined_call_operand.vmem [shape: f32[1,128], index: 2, kind: input, shape index: {}]
  %s3 = inlined_call_operand.vmem [shape: bf16[128,128], index: 3, kind: input, shape index: {}]
  %s4 = inlined_call_operand.vmem [shape: f32[1,128], index: 4, kind: input, shape index: {}]
  %s5 = inlined_call_operand.vmem [shape: f32[1,128], index: 5, kind: input, shape index: {}]
  %s6 = inlined_call_operand.vmem [shape: f32[1,128], index: 6, kind: input, shape index: {}]
  %s7 = inlined_call_operand.vmem [shape: f32[24,128], index: 7, kind: input, shape index: {}]
  %s8 = inlined_call_operand.vmem [shape: bf16[2,24,128], index: 8, kind: output, shape index: {}]
  %s9 = sld [smem:[#allocation0]]
  $region65: #{simple_vit_ft_forward.2} parent=0
    _
  %s11 = ssub.s32 1, %s9
  %s12 = scalar_select 0, %s11, %s9
  loop: start=0, step=1, limit=4
  $region2: #{simple_vit_ft_forward.2} parent=0 // loop_pre_header
    _
  $region3: #{simple_vit_ft_forward.2} parent=0 // loop_header
    %s14 = sphi 0, %s18
    %p15 = scmp.ge.s32.totalorder %s14, 4
    %s24 = sphi 0, %s26
    %s27 = sphi 0, %s24
    %s28 = sphi 0, %s27
    %s44 = sphi 0, %s28
    %s48 = sphi 0, %s48
    %s50 = sphi 0, %s48
    %s51 = sphi 0, %s50
    %s65 = sphi 0, %s51
    %s69 = sphi 0, %s69
    %s71 = sphi 0, %s69
    %s72 = sphi 0, %s71
    %s86 = sphi 0, %s72
    %s90 = sphi 0, %s90
    %s92 = sphi 0, %s90
    %s93 = sphi 0, %s92
    %s107 = sphi 0, %s93
    %s111 = sphi 0, %s111
    %s113 = sphi 0, %s111
    %s114 = sphi 0, %s113
    %s128 = sphi 0, %s114
    %s132 = sphi 0, %s132
    %s134 = sphi 0, %s132
    %s135 = sphi 0, %s134
    %s149 = sphi 0, %s135
    %s153 = sphi 0, %s153
    %s155 = sphi 0, %s153
    %s156 = sphi 0, %s155
    %s170 = sphi 0, %s156
    %s174 = sphi 0, %s174
    %s176 = sphi 0, %s174
    %s177 = sphi 0, %s176
    %s191 = sphi 0, %s177
    %s197 = sphi 0, %s199
    %s200 = sphi 0, %s197
    %s201 = sphi 0, %s200
    %s217 = sphi 0, %s201
  $region4: #{simple_vit_ft_forward.2} parent=0 // loop_header_branch
    %17 = sbr.rel (%p15) target = $region8
  $region5: #{simple_vit_ft_forward.2} parent=0 // loop_body
    %s19 = ssub.s32 %s14, 1
    %s20 = ssub.s32 %s14, 2
    %s21 = sadd.s32 %s14, 1
    %s22 = ssub.s32 %s14, %s21
    %p23 = scmp.eq.s32.totalorder %s22, 0
    %s25 = sadd.s32 %s24, 1
    %s26 = scalar_select %p23, %s24, %s25
    %p29 = pneg %p23
    %p30 = scmp.eq.s32.totalorder %s14, 1
    %p31 = por %p29, %p30
    %p32 = scmp.ne.s32.totalorder %s24, %s27
    %p33 = scmp.eq.s32.totalorder %s14, 0
    %p34 = por %p32, %p33
    %p35 = scmp.ne.s32.totalorder %s24, %s27
    %p36 = scmp.eq.s32.totalorder %s19, 1
    %p37 = por %p35, %p36
    %p38 = scmp.ne.s32.totalorder %s27, %s28
    %p39 = scmp.eq.s32.totalorder %s19, 0
    %p40 = por %p38, %p39
    %p41 = scmp.ne.s32.totalorder %s27, %s28
    %p42 = scmp.eq.s32.totalorder %s20, 1
    %p43 = por %p41, %p42
    %p45 = scmp.ne.s32.totalorder %s28, %s44
    %p46 = scmp.eq.s32.totalorder %s20, 0
    %p47 = por %p45, %p46
    %s49 = sadd.s32 %s48, 1
    %p52 = scmp.eq.s32.totalorder %s14, 1
    %p53 = scmp.ne.s32.totalorder %s48, %s50
    %p54 = scmp.eq.s32.totalorder %s14, 0
    %p55 = por %p53, %p54
    %p56 = scmp.ne.s32.totalorder %s48, %s50
    %p57 = scmp.eq.s32.totalorder %s19, 1
    %p58 = por %p56, %p57
    %p59 = scmp.ne.s32.totalorder %s50, %s51
    %p60 = scmp.eq.s32.totalorder %s19, 0
    %p61 = por %p59, %p60
    %p62 = scmp.ne.s32.totalorder %s50, %s51
    %p63 = scmp.eq.s32.totalorder %s20, 1
    %p64 = por %p62, %p63
    %p66 = scmp.ne.s32.totalorder %s51, %s65
    %p67 = scmp.eq.s32.totalorder %s20, 0
    %p68 = por %p66, %p67
    %s70 = sadd.s32 %s69, 1
    %p73 = scmp.eq.s32.totalorder %s14, 1
    %p74 = scmp.ne.s32.totalorder %s69, %s71
    %p75 = scmp.eq.s32.totalorder %s14, 0
    %p76 = por %p74, %p75
    %p77 = scmp.ne.s32.totalorder %s69, %s71
    %p78 = scmp.eq.s32.totalorder %s19, 1
    %p79 = por %p77, %p78
    %p80 = scmp.ne.s32.totalorder %s71, %s72
    %p81 = scmp.eq.s32.totalorder %s19, 0
    %p82 = por %p80, %p81
    %p83 = scmp.ne.s32.totalorder %s71, %s72
    %p84 = scmp.eq.s32.totalorder %s20, 1
    %p85 = por %p83, %p84
    %p87 = scmp.ne.s32.totalorder %s72, %s86
    %p88 = scmp.eq.s32.totalorder %s20, 0
    %p89 = por %p87, %p88
    %s91 = sadd.s32 %s90, 1
    %p94 = scmp.eq.s32.totalorder %s14, 1
    %p95 = scmp.ne.s32.totalorder %s90, %s92
    %p96 = scmp.eq.s32.totalorder %s14, 0
    %p97 = por %p95, %p96
    %p98 = scmp.ne.s32.totalorder %s90, %s92
    %p99 = scmp.eq.s32.totalorder %s19, 1
    %p100 = por %p98, %p99
    %p101 = scmp.ne.s32.totalorder %s92, %s93
    %p102 = scmp.eq.s32.totalorder %s19, 0
    %p103 = por %p101, %p102
    %p104 = scmp.ne.s32.totalorder %s92, %s93
    %p105 = scmp.eq.s32.totalorder %s20, 1
    %p106 = por %p104, %p105
    %p108 = scmp.ne.s32.totalorder %s93, %s107
    %p109 = scmp.eq.s32.totalorder %s20, 0
    %p110 = por %p108, %p109
    %s112 = sadd.s32 %s111, 1
    %p115 = scmp.eq.s32.totalorder %s14, 1
    %p116 = scmp.ne.s32.totalorder %s111, %s113
    %p117 = scmp.eq.s32.totalorder %s14, 0
    %p118 = por %p116, %p117
    %p119 = scmp.ne.s32.totalorder %s111, %s113
    %p120 = scmp.eq.s32.totalorder %s19, 1
    %p121 = por %p119, %p120
    %p122 = scmp.ne.s32.totalorder %s113, %s114
    %p123 = scmp.eq.s32.totalorder %s19, 0
    %p124 = por %p122, %p123
    %p125 = scmp.ne.s32.totalorder %s113, %s114
    %p126 = scmp.eq.s32.totalorder %s20, 1
    %p127 = por %p125, %p126
    %p129 = scmp.ne.s32.totalorder %s114, %s128
    %p130 = scmp.eq.s32.totalorder %s20, 0
    %p131 = por %p129, %p130
    %s133 = sadd.s32 %s132, 1
    %p136 = scmp.eq.s32.totalorder %s14, 1
    %p137 = scmp.ne.s32.totalorder %s132, %s134
    %p138 = scmp.eq.s32.totalorder %s14, 0
    %p139 = por %p137, %p138
    %p140 = scmp.ne.s32.totalorder %s132, %s134
    %p141 = scmp.eq.s32.totalorder %s19, 1
    %p142 = por %p140, %p141
    %p143 = scmp.ne.s32.totalorder %s134, %s135
    %p144 = scmp.eq.s32.totalorder %s19, 0
    %p145 = por %p143, %p144
    %p146 = scmp.ne.s32.totalorder %s134, %s135
    %p147 = scmp.eq.s32.totalorder %s20, 1
    %p148 = por %p146, %p147
    %p150 = scmp.ne.s32.totalorder %s135, %s149
    %p151 = scmp.eq.s32.totalorder %s20, 0
    %p152 = por %p150, %p151
    %s154 = sadd.s32 %s153, 1
    %p157 = scmp.eq.s32.totalorder %s14, 1
    %p158 = scmp.ne.s32.totalorder %s153, %s155
    %p159 = scmp.eq.s32.totalorder %s14, 0
    %p160 = por %p158, %p159
    %p161 = scmp.ne.s32.totalorder %s153, %s155
    %p162 = scmp.eq.s32.totalorder %s19, 1
    %p163 = por %p161, %p162
    %p164 = scmp.ne.s32.totalorder %s155, %s156
    %p165 = scmp.eq.s32.totalorder %s19, 0
    %p166 = por %p164, %p165
    %p167 = scmp.ne.s32.totalorder %s155, %s156
    %p168 = scmp.eq.s32.totalorder %s20, 1
    %p169 = por %p167, %p168
    %p171 = scmp.ne.s32.totalorder %s156, %s170
    %p172 = scmp.eq.s32.totalorder %s20, 0
    %p173 = por %p171, %p172
    %s175 = sadd.s32 %s174, 1
    %p178 = scmp.eq.s32.totalorder %s14, 1
    %p179 = scmp.ne.s32.totalorder %s174, %s176
    %p180 = scmp.eq.s32.totalorder %s14, 0
    %p181 = por %p179, %p180
    %p182 = scmp.ne.s32.totalorder %s174, %s176
    %p183 = scmp.eq.s32.totalorder %s19, 1
    %p184 = por %p182, %p183
    %p185 = scmp.ne.s32.totalorder %s176, %s177
    %p186 = scmp.eq.s32.totalorder %s19, 0
    %p187 = por %p185, %p186
    %p188 = scmp.ne.s32.totalorder %s176, %s177
    %p189 = scmp.eq.s32.totalorder %s20, 1
    %p190 = por %p188, %p189
    %p192 = scmp.ne.s32.totalorder %s177, %s191
    %p193 = scmp.eq.s32.totalorder %s20, 0
    %p194 = por %p192, %p193
    %s195 = ssub.s32 %s14, %s21
    %p196 = scmp.eq.s32.totalorder %s195, 0
    %s198 = sadd.s32 %s197, 1
    %s199 = scalar_select %p196, %s197, %s198
    %p202 = pneg %p196
    %p203 = scmp.eq.s32.totalorder %s14, 1
    %p204 = por %p202, %p203
    %p205 = scmp.ne.s32.totalorder %s197, %s200
    %p206 = scmp.eq.s32.totalorder %s14, 0
    %p207 = por %p205, %p206
    %p208 = scmp.ne.s32.totalorder %s197, %s200
    %p209 = scmp.eq.s32.totalorder %s19, 1
    %p210 = por %p208, %p209
    %p211 = scmp.ne.s32.totalorder %s200, %s201
    %p212 = scmp.eq.s32.totalorder %s19, 0
    %p213 = por %p211, %p212
    %p214 = scmp.ne.s32.totalorder %s200, %s201
    %p215 = scmp.eq.s32.totalorder %s20, 1
    %p216 = por %p214, %p215
    %p218 = scmp.ne.s32.totalorder %s201, %s217
    %p219 = scmp.eq.s32.totalorder %s20, 0
    %p220 = por %p218, %p219
    %p221 = scmp.le.s32.totalorder 1, %s14
    %p222 = scmp.lt.s32.totalorder %s14, 3
    %p223 = pnand %p221, %p222
    %p224 = pneg %p223
    // Predicated region
    $region9: #{simple_vit_ft_forward.2} parent=5 // pred_check
      _
    $region10: #{simple_vit_ft_forward.2} parent=5 // pred_check_branch
      %226 = sbr.rel (%p223) target = $region12
    $region11: #{simple_vit_ft_forward.2} parent=5 // pred_region
      %s227 = ssub.s32 %s14, 1
      // Predicated region
      $region13: #{simple_vit_ft_forward.2} parent=11 // pred_check
        %p228 = pneg %p61
      $region14: #{simple_vit_ft_forward.2} parent=11 // pred_check_branch
        %230 = sbr.rel (%p228) target = $region16
      $region15: #{simple_vit_ft_forward.2} parent=11 // pred_region
        _
      $region16: #{simple_vit_ft_forward.2} parent=11 // pred_fallthru
        _
      // Predicated region
      $region17: #{simple_vit_ft_forward.2} parent=11 // pred_check
        %p231 = pneg %p82
      $region18: #{simple_vit_ft_forward.2} parent=11 // pred_check_branch
        %233 = sbr.rel (%p231) target = $region20
      $region19: #{simple_vit_ft_forward.2} parent=11 // pred_region
        _
      $region20: #{simple_vit_ft_forward.2} parent=11 // pred_fallthru
        _
      // Predicated region
      $region21: #{simple_vit_ft_forward.2} parent=11 // pred_check
        %p234 = pneg %p103
      $region22: #{simple_vit_ft_forward.2} parent=11 // pred_check_branch
        %236 = sbr.rel (%p234) target = $region24
      $region23: #{simple_vit_ft_forward.2} parent=11 // pred_region
        _
      $region24: #{simple_vit_ft_forward.2} parent=11 // pred_fallthru
        _
      // Predicated region
      $region25: #{simple_vit_ft_forward.2} parent=11 // pred_check
        %p237 = pneg %p124
      $region26: #{simple_vit_ft_forward.2} parent=11 // pred_check_branch
        %239 = sbr.rel (%p237) target = $region28
      $region27: #{simple_vit_ft_forward.2} parent=11 // pred_region
        _
      $region28: #{simple_vit_ft_forward.2} parent=11 // pred_fallthru
        _
      // Predicated region
      $region29: #{simple_vit_ft_forward.2} parent=11 // pred_check
        %p240 = pneg %p145
      $region30: #{simple_vit_ft_forward.2} parent=11 // pred_check_branch
        %242 = sbr.rel (%p240) target = $region32
      $region31: #{simple_vit_ft_forward.2} parent=11 // pred_region
        _
      $region32: #{simple_vit_ft_forward.2} parent=11 // pred_fallthru
        _
      // Predicated region
      $region33: #{simple_vit_ft_forward.2} parent=11 // pred_check
        %p243 = pneg %p166
      $region34: #{simple_vit_ft_forward.2} parent=11 // pred_check_branch
        %245 = sbr.rel (%p243) target = $region36
      $region35: #{simple_vit_ft_forward.2} parent=11 // pred_region
        _
      $region36: #{simple_vit_ft_forward.2} parent=11 // pred_fallthru
        _
      // Predicated region
      $region37: #{simple_vit_ft_forward.2} parent=11 // pred_check
        %p246 = pneg %p187
      $region38: #{simple_vit_ft_forward.2} parent=11 // pred_check_branch
        %248 = sbr.rel (%p246) target = $region40
      $region39: #{simple_vit_ft_forward.2} parent=11 // pred_region
        _
      $region40: #{simple_vit_ft_forward.2} parent=11 // pred_fallthru
        _
    $region12: #{simple_vit_ft_forward.2} parent=5 // pred_fallthru
      _
    %p249 = scmp.lt.s32.totalorder %s14, 2
    // Predicated region
    $region41: #{simple_vit_ft_forward.2} parent=5 // pred_check
      %p250 = pneg %p249
    $region42: #{simple_vit_ft_forward.2} parent=5 // pred_check_branch
      %252 = sbr.rel (%p250) target = $region44
    $region43: #{simple_vit_ft_forward.2} parent=5 // pred_region
      // Predicated region
      $region45: #{simple_vit_ft_forward.2} parent=43 // pred_check
        %p253 = pneg %p34
      $region46: #{simple_vit_ft_forward.2} parent=43 // pred_check_branch
        %255 = sbr.rel (%p253) target = $region48
      $region47: #{simple_vit_ft_forward.2} parent=43 // pred_region
        %p256 = scmp.lt.s32.totalorder %s14, 1
        %s257 = scalar_select %p256, %s14, 1
        %s258 = smul.addr %s257, 3
        %s259 = smul.addr %s258, 4
        %s260 = scalar_lea.vmem %s0, %s259
      $region48: #{simple_vit_ft_forward.2} parent=43 // pred_fallthru
        _
    $region44: #{simple_vit_ft_forward.2} parent=5 // pred_fallthru
      _
    %p261 = scmp.le.s32.totalorder 1, %s14
    %p262 = scmp.lt.s32.totalorder %s14, 3
    %p263 = pnand %p261, %p262
    %p264 = pneg %p263
    // Predicated region
    $region49: #{simple_vit_ft_forward.2} parent=5 // pred_check
      _
    $region50: #{simple_vit_ft_forward.2} parent=5 // pred_check_branch
      %266 = sbr.rel (%p263) target = $region52
    $region51: #{simple_vit_ft_forward.2} parent=5 // pred_region
      %s267 = ssub.s32 %s14, 1
      %p268 = scmp.lt.s32.totalorder %s19, 1
      %s269 = scalar_select %p268, %s19, 1
      %s270 = smul.addr %s269, 3
      %s271 = smul.addr %s270, 4
      %s272 = scalar_lea.vmem %s0, %s271
      %p273 = pneg %p40
      %p274 = pneg %p37
      %p275 = pneg %p61
      %p276 = pneg %p58
      %p277 = pneg %p82
      %p278 = pneg %p79
      %p279 = pneg %p103
      %p280 = pneg %p100
      %p281 = pneg %p124
      %p282 = pneg %p121
      %p283 = pneg %p145
      %p284 = pneg %p142
      %p285 = pneg %p166
      %p286 = pneg %p163
      %p287 = pneg %p187
      %p288 = pneg %p184
      %p289 = pneg %p213
      %p290 = pneg %p210
      %p291 = scmp.lt.s32.totalorder %s19, 1
      %s292 = scalar_select %p291, %s19, 1
      %s293 = smul.addr %s292, 3
      %s294 = smul.addr %s293, 4
      %s295 = scalar_lea.vmem %s8, %s294
      %p296 = scmp.lt.s32.totalorder %s19, 1
      %s297 = scalar_select %p296, %s19, 1
      %s298 = smul.addr %s297, 3
      %s299 = smul.addr %s298, 4
      %s300 = scalar_lea.vmem %s0, %s299
      %p301 = scmp.lt.s32.totalorder %s19, 1
      %s302 = scalar_select %p301, %s19, 1
      %s303 = smul.addr %s302, 3
      %s304 = smul.addr %s303, 4
      %s305 = scalar_lea.vmem %s8, %s304
      %v307 = vld [vmem:[%s300] sm:$0xf]
      %v308 = vld [vmem:[%s300 + $0x4] sm:$0xf]
      %v309 = vld [vmem:[%s300 + $0x8] sm:$0xf]
      %v310 = vunpack.c.l.bf16 %v307
      %v311 = vunpack.c.l.bf16 %v308
      %v312 = vunpack.c.l.bf16 %v309
      %v313 = vld [vmem:[%s1] sm:$0x1]
      %v314 = vld [vmem:[%s2] sm:$0x1]
      %315 = vadd.xlane.f32.xlu0 %v310
      %v316 = vpop.xlane.xlu0 %315
      %317 = vadd.xlane.f32.xlu0 %v311
      %v318 = vpop.xlane.xlu0 %317
      %319 = vadd.xlane.f32.xlu0 %v312
      %v320 = vpop.xlane.xlu0 %319
      %v321 = vmul.f32 %v316, 0.015625
      %v322 = vmul.f32 %v318, 0.015625
      %v323 = vmul.f32 %v320, 0.015625
      %v324 = vsub.f32 %v310, %v321
      %v325 = vsub.f32 %v311, %v322
      %v326 = vsub.f32 %v312, %v323
      %v327 = vmul.f32 %v324, %v324
      %v328 = vmul.f32 %v325, %v325
      %v329 = vmul.f32 %v326, %v326
      %330 = vadd.xlane.f32.xlu0 %v327
      %v331 = vpop.xlane.xlu0 %330
      %332 = vadd.xlane.f32.xlu0 %v328
      %v333 = vpop.xlane.xlu0 %332
      %334 = vadd.xlane.f32.xlu0 %v329
      %v335 = vpop.xlane.xlu0 %334
      %v336 = vmul.f32 %v321, %v321
      %v337 = vmul.f32 %v322, %v322
      %v338 = vmul.f32 %v323, %v323
      %v339 = vmul.f32 %v336, 64.0
      %v340 = vmul.f32 %v337, 64.0
      %v341 = vmul.f32 %v338, 64.0
      %v342 = vsub.f32 %v331, %v339
      %v343 = vsub.f32 %v333, %v340
      %v344 = vsub.f32 %v335, %v341
      %v345 = vmul.f32 %v342, 0.015625
      %v346 = vmul.f32 %v343, 0.015625
      %v347 = vmul.f32 %v344, 0.015625
      %v348 = vadd.f32 %v345, 1e-05
      %v349 = vadd.f32 %v346, 1e-05
      %v350 = vadd.f32 %v347, 1e-05
      %v351 = vrsqrt.pop %v348
      %v352 = vrsqrt.pop %v349
      %v353 = vrsqrt.pop %v350
      %v354 = vmul.f32 %v324, %v351
      %v355 = vmul.f32 %v325, %v352
      %v356 = vmul.f32 %v326, %v353
      %v358 = vlaneseq
      %v359 = vshrl.u32 %v358, 7
      %v360 = vsub.s32 0, %v359
      %v361 = vrot.slane %v313, %v360
      %v363 = vmul.f32 %v354, %v361
      %v364 = vmul.f32 %v355, %v361
      %v365 = vmul.f32 %v356, %v361
      %v367 = vlaneseq
      %v368 = vshrl.u32 %v367, 7
      %v369 = vsub.s32 0, %v368
      %v370 = vrot.slane %v314, %v369
      %v372 = vadd.f32 %v363, %v370
      %v373 = vadd.f32 %v364, %v370
      %v374 = vadd.f32 %v365, %v370
      %v375 = vpack.c.bf16 %v373, %v372
      %v376 = vpack.c.bf16 %v374, %v374
      %v377 = vld [vmem:[%s3] sm:$0xf]
      %v378 = vld [vmem:[%s3 + $0x4] sm:$0xf]
      %v379 = vld [vmem:[%s3 + $0x8] sm:$0xf]
      %v380 = vld [vmem:[%s3 + $0xc] sm:$0xf]
      %v381 = vld [vmem:[%s3 + $0x10] sm:$0xf]
      %v382 = vld [vmem:[%s3 + $0x14] sm:$0xf]
      %v383 = vld [vmem:[%s3 + $0x18] sm:$0xf]
      %v384 = vld [vmem:[%s3 + $0x1c] sm:$0xf]
      %v385 = vld [vmem:[%s3 + $0x20] sm:$0xf]
      %v386 = vld [vmem:[%s3 + $0x24] sm:$0xf]
      %v387 = vld [vmem:[%s3 + $0x28] sm:$0xf]
      %v388 = vld [vmem:[%s3 + $0x2c] sm:$0xf]
      %v389 = vld [vmem:[%s3 + $0x30] sm:$0xf]
      %v390 = vld [vmem:[%s3 + $0x34] sm:$0xf]
      %v391 = vld [vmem:[%s3 + $0x38] sm:$0xf]
      %v392 = vld [vmem:[%s3 + $0x3c] sm:$0xf]
      %v393 = vld [vmem:[%s4] sm:$0x1]
      %v395 = vlaneseq
      %v396 = vshrl.u32 %v395, 7
      %v397 = vsub.s32 0, %v396
      %v398 = vrot.slane %v393, %v397
      %v416 = vunpack.c.l.b16 %v377
      %v417 = vunpack.c.l.b16 %v378
      %v418 = vunpack.c.l.b16 %v379
      %v419 = vunpack.c.l.b16 %v380
      %v420 = vunpack.c.l.b16 %v381
      %v421 = vunpack.c.l.b16 %v382
      %v422 = vunpack.c.l.b16 %v383
      %v423 = vunpack.c.l.b16 %v384
      %v424 = vunpack.c.l.b16 %v385
      %v425 = vunpack.c.l.b16 %v386
      %v426 = vunpack.c.l.b16 %v387
      %v427 = vunpack.c.l.b16 %v388
      %v428 = vunpack.c.l.b16 %v389
      %v429 = vunpack.c.l.b16 %v390
      %v430 = vunpack.c.l.b16 %v391
      %v431 = vunpack.c.l.b16 %v392
      %v432 = vpack.c.b16 %v417, %v416
      %v433 = vpack.c.b16 %v419, %v418
      %v434 = vpack.c.b16 %v421, %v420
      %v435 = vpack.c.b16 %v423, %v422
      %v436 = vpack.c.b16 %v425, %v424
      %v437 = vpack.c.b16 %v427, %v426
      %v438 = vpack.c.b16 %v429, %v428
      %v439 = vpack.c.b16 %v431, %v430
      %448 = vmatprep.subr.bf16.mxu0 0
      %449 = vmatpush1.bf16.msra.mxu0 %v432
      %450 = vmatprep.subr.bf16.mxu0 0
      %451 = vmatpush1.bf16.msra.mxu0 %v433
      %452 = vmatprep.subr.bf16.mxu0 0
      %453 = vmatpush1.bf16.msra.mxu0 %v434
      %454 = vmatprep.subr.bf16.mxu0 0
      %455 = vmatpush1.bf16.msra.mxu0 %v435
      %456 = vmatprep.subr.bf16.mxu0 0
      %457 = vmatpush1.bf16.msra.mxu0 %v436
      %458 = vmatprep.subr.bf16.mxu0 0
      %459 = vmatpush1.bf16.msra.mxu0 %v437
      %460 = vmatprep.subr.bf16.mxu0 0
      %461 = vmatpush1.bf16.msra.mxu0 %v438
      %462 = vmatprep.subr.bf16.mxu0 0
      %463 = vmatpush1.bf16.msra.mxu0 %v439
      %464 = vmatprep.subr.bf16.mxu0 0
      %465 = vmatpush1.bf16.msra.mxu0 0
      %466 = vmatprep.subr.bf16.mxu0 0
      %467 = vmatpush1.bf16.msra.mxu0 0
      %468 = vmatprep.subr.bf16.mxu0 0
      %469 = vmatpush1.bf16.msra.mxu0 0
      %470 = vmatprep.subr.bf16.mxu0 0
      %471 = vmatpush1.bf16.msra.mxu0 0
      %472 = vmatprep.subr.bf16.mxu0 0
      %473 = vmatpush1.bf16.msra.mxu0 0
      %474 = vmatprep.subr.bf16.mxu0 0
      %475 = vmatpush1.bf16.msra.mxu0 0
      %476 = vmatprep.subr.bf16.mxu0 0
      %477 = vmatpush1.bf16.msra.mxu0 0
      %478 = vmatprep.subr.bf16.mxu0 0
      %479 = vmatpush1.bf16.msra.mxu0 0
      %480 = vmatprep.mubr.bf16.mxu0 0
      %481 = vmatmul.mubr.bf16.gmra.mrb[0].mxu0 %v375
      %v482 = vpop.f32.mrb[0].mxu0
      %v483 = vadd.f32 %v398, %v482
      %v484 = vpop.f32.mrb[0].mxu0
      %v485 = vpop.f32.mrb[0].mxu0
      %v486 = vadd.f32 %v398, %v485
      %v487 = vpop.f32.mrb[0].mxu0
      %488 = vmatprep.mubr.bf16.mxu0 0
      %489 = vmatmul.mubr.bf16.gmra.mrb[0].mxu0 %v376
      %v490 = vpop.f32.mrb[0].mxu0
      %v491 = vadd.f32 %v398, %v490
      %v492 = vpop.f32.mrb[0].mxu0
      %v493 = vpop.f32.mrb[0].mxu0
      %v494 = vpop.f32.mrb[0].mxu0
      %495 = vdwg.mxu0
      %v496 = vld [vmem:[%s5] sm:$0x1]
      %v497 = vld [vmem:[%s6] sm:$0x1]
      %498 = vadd.xlane.f32.xlu0 %v483
      %v499 = vpop.xlane.xlu0 %498
      %500 = vadd.xlane.f32.xlu0 %v486
      %v501 = vpop.xlane.xlu0 %500
      %502 = vadd.xlane.f32.xlu0 %v491
      %v503 = vpop.xlane.xlu0 %502
      %v504 = vmul.f32 %v499, 0.03125
      %v505 = vmul.f32 %v501, 0.03125
      %v506 = vmul.f32 %v503, 0.03125
      %v507 = vsub.f32 %v483, %v504
      %v508 = vsub.f32 %v486, %v505
      %v509 = vsub.f32 %v491, %v506
      %v510 = vmul.f32 %v507, %v507
      %v511 = vmul.f32 %v508, %v508
      %v512 = vmul.f32 %v509, %v509
      %513 = vadd.xlane.f32.xlu0 %v510
      %v514 = vpop.xlane.xlu0 %513
      %515 = vadd.xlane.f32.xlu0 %v511
      %v516 = vpop.xlane.xlu0 %515
      %517 = vadd.xlane.f32.xlu0 %v512
      %v518 = vpop.xlane.xlu0 %517
      %v519 = vmul.f32 %v504, %v504
      %v520 = vmul.f32 %v505, %v505
      %v521 = vmul.f32 %v506, %v506
      %v522 = vmul.f32 %v519, 96.0
      %v523 = vmul.f32 %v520, 96.0
      %v524 = vmul.f32 %v521, 96.0
      %v525 = vsub.f32 %v514, %v522
      %v526 = vsub.f32 %v516, %v523
      %v527 = vsub.f32 %v518, %v524
      %v528 = vmul.f32 %v525, 0.03125
      %v529 = vmul.f32 %v526, 0.03125
      %v530 = vmul.f32 %v527, 0.03125
      %v531 = vadd.f32 %v528, 1e-05
      %v532 = vadd.f32 %v529, 1e-05
      %v533 = vadd.f32 %v530, 1e-05
      %v534 = vrsqrt.pop %v531
      %v535 = vrsqrt.pop %v532
      %v536 = vrsqrt.pop %v533
      %v537 = vmul.f32 %v507, %v534
      %v538 = vmul.f32 %v508, %v535
      %v539 = vmul.f32 %v509, %v536
      %v541 = vlaneseq
      %v542 = vshrl.u32 %v541, 7
      %v543 = vsub.s32 0, %v542
      %v544 = vrot.slane %v496, %v543
      %v546 = vmul.f32 %v537, %v544
      %v547 = vmul.f32 %v538, %v544
      %v548 = vmul.f32 %v539, %v544
      %v550 = vlaneseq
      %v551 = vshrl.u32 %v550, 7
      %v552 = vsub.s32 0, %v551
      %v553 = vrot.slane %v497, %v552
      %v555 = vadd.f32 %v546, %v553
      %v556 = vadd.f32 %v547, %v553
      %v557 = vadd.f32 %v548, %v553
      %v558 = vlaneseq
      %v559 = vshrl.u32 %v558, 7
      %v560 = vadd.s32 %v559, 8
      %v561 = vadd.s32 %v559, 16
      %vm562 = vcmp.ge.s32.totalorder %v559, 1
      %vm563 = vcmp.ge.s32.totalorder %v560, 1
      %vm564 = vcmp.ge.s32.totalorder %v561, 1
      %vm565 = vcmp.lt.s32.totalorder %v559, 17
      %vm566 = vcmp.lt.s32.totalorder %v560, 17
      %vm567 = vcmp.lt.s32.totalorder %v561, 17
      %vm568 = vmand %vm562, %vm565
      %vm569 = vmand %vm563, %vm566
      %vm570 = vmand %vm564, %vm567
      %v571 = vsel %vm568, 1, 0
      %v572 = vsel %vm569, 1, 0
      %v573 = vsel %vm570, 1, 0
      %v574 = vcvt.s32.f32 %v571
      %v575 = vcvt.s32.f32 %v572
      %v576 = vcvt.s32.f32 %v573
      %v577 = vmul.f32 %v555, %v574
      %v578 = vmul.f32 %v556, %v575
      %v579 = vmul.f32 %v557, %v576
      %v580 = vld [vmem:[%s7] sm:$0xff]
      %v581 = vld [vmem:[%s7 + $0x8] sm:$0xff]
      %v582 = vld [vmem:[%s7 + $0x10] sm:$0xff]
      %v583 = vadd.f32 %v577, %v580
      %v584 = vadd.f32 %v578, %v581
      %v585 = vadd.f32 %v579, %v582
      %v586 = vpack.c.bf16 %v584, %v583
      %v587 = vpack.c.bf16 %v585, %v585
      %v590 = vunpack.c.l.b16 %v586
      %v591 = vunpack.c.h.b16 %v586
      %v592 = vunpack.c.l.b16 %v587
      %v593 = vpack.c.b16 %v590, %v590
      %v594 = vpack.c.b16 %v591, %v591
      %v595 = vpack.c.b16 %v592, %v592
      %599 = vst [vmem:[%s305] sm:$0xf] %v593
      %600 = vst [vmem:[%s305 + $0x4] sm:$0xf] %v594
      %601 = vst [vmem:[%s305 + $0x8] sm:$0xf] %v595
      %p602 = scmp.lt.s32.totalorder %s19, 1
      %s603 = scalar_select %p602, %s19, 1
      %s604 = smul.addr %s603, 3
      %s605 = smul.addr %s604, 4
      %s606 = scalar_lea.vmem %s8, %s605
      // Predicated region
      $region53: #{simple_vit_ft_forward.2} parent=51 // pred_check
        %p607 = pneg %p210
      $region54: #{simple_vit_ft_forward.2} parent=51 // pred_check_branch
        %609 = sbr.rel (%p607) target = $region56
      $region55: #{simple_vit_ft_forward.2} parent=51 // pred_region
        _
      $region56: #{simple_vit_ft_forward.2} parent=51 // pred_fallthru
        _
    $region52: #{simple_vit_ft_forward.2} parent=5 // pred_fallthru
      _
    %p610 = scmp.le.s32.totalorder 2, %s14
    // Predicated region
    $region57: #{simple_vit_ft_forward.2} parent=5 // pred_check
      %p611 = pneg %p610
    $region58: #{simple_vit_ft_forward.2} parent=5 // pred_check_branch
      %613 = sbr.rel (%p611) target = $region60
    $region59: #{simple_vit_ft_forward.2} parent=5 // pred_region
      %s614 = ssub.s32 %s14, 2
      // Predicated region
      $region61: #{simple_vit_ft_forward.2} parent=59 // pred_check
        %p615 = pneg %p216
      $region62: #{simple_vit_ft_forward.2} parent=59 // pred_check_branch
        %617 = sbr.rel (%p615) target = $region64
      $region63: #{simple_vit_ft_forward.2} parent=59 // pred_region
        %p618 = scmp.lt.s32.totalorder %s20, 1
        %s619 = scalar_select %p618, %s20, 1
        %s620 = smul.addr %s619, 3
        %s621 = smul.addr %s620, 4
        %s622 = scalar_lea.vmem %s8, %s621
      $region64: #{simple_vit_ft_forward.2} parent=59 // pred_fallthru
        _
    $region60: #{simple_vit_ft_forward.2} parent=5 // pred_fallthru
      _
  $region6: #{simple_vit_ft_forward.2} parent=0 // loop_footer
    %s18 = sadd.s32 1, %s14
  $region7: #{simple_vit_ft_forward.2} parent=0 // loop_footer_branch
    %13 = sbr.rel target = $region3
  $region8: #{simple_vit_ft_forward.2} parent=0 // loop_exit
    _

// kernel: simple_vit_ft_forward.3
$region0: #{simple_vit_ft_forward.3}
  #allocation0 [shape = 'u32[]', space=smem, size = 0x4, offset = 0x4, fixed_abs, tag = 'smem constant byte address 0x4 - core index']
  #allocation1 [shape = 'u32[144,128]{1,0:T(1,128)}', space=vmem, size = 0x12000, scoped, tag = 'internal scratch']
  #allocation2 [shape = 'f32[1,24,128]{2,1,0:T(8,128)}', space=vmem, size = 0x3000, scoped, tag = 'scratch operand']
  %s0 = inlined_call_operand.vmem [shape: bf16[2,24,128], index: 0, kind: input, shape index: {}, may-alias: {0,2}]
  %s1 = inlined_call_operand.vmem [shape: bf16[2,128,384], index: 1, kind: input, shape index: {}]
  %s2 = inlined_call_operand.vmem [shape: bf16[2,24,128], index: 2, kind: output, shape index: {}, may-alias: {0,2}]
  %s3 = sld [smem:[#allocation0]]
  $region49: #{simple_vit_ft_forward.3} parent=0
    _
  %s5 = ssub.s32 1, %s3
  %s6 = scalar_select 0, %s5, %s3
  loop: start=0, step=1, limit=6
  $region2: #{simple_vit_ft_forward.3} parent=0 // loop_pre_header
    _
  $region3: #{simple_vit_ft_forward.3} parent=0 // loop_header
    %s8 = sphi 0, %s12
    %p9 = scmp.ge.s32.totalorder %s8, 6
    %s15 = sphi 0, %s27
    %s16 = sphi 0, %s23
    %s17 = sphi 0, %s15
    %s18 = sphi 0, %s16
    %s19 = sphi 0, %s17
    %s20 = sphi 0, %s18
    %s30 = sphi 0, %s32
    %s33 = sphi 0, %s30
    %s34 = sphi 0, %s33
    %s50 = sphi 0, %s34
    %s54 = sphi 0, %s54
    %s56 = sphi 0, %s54
    %s57 = sphi 0, %s56
    %s71 = sphi 0, %s57
    %s77 = sphi 0, %s79
    %s80 = sphi 0, %s77
    %s81 = sphi 0, %s80
    %s97 = sphi 0, %s81
  $region4: #{simple_vit_ft_forward.3} parent=0 // loop_header_branch
    %11 = sbr.rel (%p9) target = $region8
  $region5: #{simple_vit_ft_forward.3} parent=0 // loop_body
    %s13 = ssub.s32 %s8, 1
    %s14 = ssub.s32 %s8, 2
    %s21 = sadd.s32 1, %s16
    %p22 = scmp.ge.s32.totalorder %s21, 2
    %s23 = scalar_select %p22, 0, %s21
    %s24 = sadd.s32 1, %s15
    %s25 = scalar_select %p22, %s24, %s15
    %p26 = scmp.ge.s32.totalorder %s25, 2
    %s27 = scalar_select %p26, 0, %s25
    %s28 = ssub.s32 %s15, %s27
    %p29 = scmp.eq.s32.totalorder %s28, 0
    %s31 = sadd.s32 %s30, 1
    %s32 = scalar_select %p29, %s30, %s31
    %p35 = pneg %p29
    %p36 = scmp.eq.s32.totalorder %s8, 3
    %p37 = por %p35, %p36
    %p38 = scmp.ne.s32.totalorder %s30, %s33
    %p39 = scmp.eq.s32.totalorder %s8, 0
    %p40 = por %p38, %p39
    %p41 = scmp.ne.s32.totalorder %s30, %s33
    %p42 = scmp.eq.s32.totalorder %s13, 3
    %p43 = por %p41, %p42
    %p44 = scmp.ne.s32.totalorder %s33, %s34
    %p45 = scmp.eq.s32.totalorder %s13, 0
    %p46 = por %p44, %p45
    %p47 = scmp.ne.s32.totalorder %s33, %s34
    %p48 = scmp.eq.s32.totalorder %s14, 3
    %p49 = por %p47, %p48
    %p51 = scmp.ne.s32.totalorder %s34, %s50
    %p52 = scmp.eq.s32.totalorder %s14, 0
    %p53 = por %p51, %p52
    %s55 = sadd.s32 %s54, 1
    %p58 = scmp.eq.s32.totalorder %s8, 3
    %p59 = scmp.ne.s32.totalorder %s54, %s56
    %p60 = scmp.eq.s32.totalorder %s8, 0
    %p61 = por %p59, %p60
    %p62 = scmp.ne.s32.totalorder %s54, %s56
    %p63 = scmp.eq.s32.totalorder %s13, 3
    %p64 = por %p62, %p63
    %p65 = scmp.ne.s32.totalorder %s56, %s57
    %p66 = scmp.eq.s32.totalorder %s13, 0
    %p67 = por %p65, %p66
    %p68 = scmp.ne.s32.totalorder %s56, %s57
    %p69 = scmp.eq.s32.totalorder %s14, 3
    %p70 = por %p68, %p69
    %p72 = scmp.ne.s32.totalorder %s57, %s71
    %p73 = scmp.eq.s32.totalorder %s14, 0
    %p74 = por %p72, %p73
    %s75 = ssub.s32 %s15, %s27
    %p76 = scmp.eq.s32.totalorder %s75, 0
    %s78 = sadd.s32 %s77, 1
    %s79 = scalar_select %p76, %s77, %s78
    %p82 = pneg %p76
    %p83 = scmp.eq.s32.totalorder %s8, 3
    %p84 = por %p82, %p83
    %p85 = scmp.ne.s32.totalorder %s77, %s80
    %p86 = scmp.eq.s32.totalorder %s8, 0
    %p87 = por %p85, %p86
    %p88 = scmp.ne.s32.totalorder %s77, %s80
    %p89 = scmp.eq.s32.totalorder %s13, 3
    %p90 = por %p88, %p89
    %p91 = scmp.ne.s32.totalorder %s80, %s81
    %p92 = scmp.eq.s32.totalorder %s13, 0
    %p93 = por %p91, %p92
    %p94 = scmp.ne.s32.totalorder %s80, %s81
    %p95 = scmp.eq.s32.totalorder %s14, 3
    %p96 = por %p94, %p95
    %p98 = scmp.ne.s32.totalorder %s81, %s97
    %p99 = scmp.eq.s32.totalorder %s14, 0
    %p100 = por %p98, %p99
    %p101 = scmp.le.s32.totalorder 1, %s8
    %p102 = scmp.lt.s32.totalorder %s8, 5
    %p103 = pnand %p101, %p102
    %p104 = pneg %p103
    // Predicated region
    $region9: #{simple_vit_ft_forward.3} parent=5 // pred_check
      _
    $region10: #{simple_vit_ft_forward.3} parent=5 // pred_check_branch
      %106 = sbr.rel (%p103) target = $region12
    $region11: #{simple_vit_ft_forward.3} parent=5 // pred_region
      %s107 = ssub.s32 %s8, 1
      // Predicated region
      $region13: #{simple_vit_ft_forward.3} parent=11 // pred_check
        %p108 = pneg %p67
      $region14: #{simple_vit_ft_forward.3} parent=11 // pred_check_branch
        %110 = sbr.rel (%p108) target = $region16
      $region15: #{simple_vit_ft_forward.3} parent=11 // pred_region
        _
      $region16: #{simple_vit_ft_forward.3} parent=11 // pred_fallthru
        _
    $region12: #{simple_vit_ft_forward.3} parent=5 // pred_fallthru
      _
    %p111 = scmp.lt.s32.totalorder %s8, 4
    // Predicated region
    $region17: #{simple_vit_ft_forward.3} parent=5 // pred_check
      %p112 = pneg %p111
    $region18: #{simple_vit_ft_forward.3} parent=5 // pred_check_branch
      %114 = sbr.rel (%p112) target = $region20
    $region19: #{simple_vit_ft_forward.3} parent=5 // pred_region
      // Predicated region
      $region21: #{simple_vit_ft_forward.3} parent=19 // pred_check
        %p115 = pneg %p40
      $region22: #{simple_vit_ft_forward.3} parent=19 // pred_check_branch
        %117 = sbr.rel (%p115) target = $region24
      $region23: #{simple_vit_ft_forward.3} parent=19 // pred_region
        %p118 = scmp.lt.s32.totalorder %s15, 1
        %s119 = scalar_select %p118, %s15, 1
        %s120 = smul.addr %s119, 3
        %s121 = smul.addr %s120, 4
        %s122 = scalar_lea.vmem %s0, %s121
      $region24: #{simple_vit_ft_forward.3} parent=19 // pred_fallthru
        _
    $region20: #{simple_vit_ft_forward.3} parent=5 // pred_fallthru
      _
    %p123 = scmp.le.s32.totalorder 1, %s8
    %p124 = scmp.lt.s32.totalorder %s8, 5
    %p125 = pnand %p123, %p124
    %p126 = pneg %p125
    // Predicated region
    $region25: #{simple_vit_ft_forward.3} parent=5 // pred_check
      _
    $region26: #{simple_vit_ft_forward.3} parent=5 // pred_check_branch
      %128 = sbr.rel (%p125) target = $region28
    $region27: #{simple_vit_ft_forward.3} parent=5 // pred_region
      %s129 = ssub.s32 %s8, 1
      %p130 = scmp.lt.s32.totalorder %s17, 1
      %s131 = scalar_select %p130, %s17, 1
      %s132 = smul.addr %s131, 3
      %s133 = smul.addr %s132, 4
      %s134 = scalar_lea.vmem %s0, %s133
      %p135 = pneg %p46
      %p136 = pneg %p43
      %p137 = pneg %p67
      %p138 = pneg %p64
      %p139 = pneg %p93
      %p140 = pneg %p90
      %p141 = scmp.lt.s32.totalorder %s17, 1
      %s142 = scalar_select %p141, %s17, 1
      %s143 = smul.addr %s142, 3
      %s144 = smul.addr %s143, 4
      %s145 = scalar_lea.vmem %s2, %s144
      %p146 = scmp.lt.s32.totalorder %s17, 1
      %s147 = scalar_select %p146, %s17, 1
      %s148 = smul.addr %s147, 3
      %s149 = smul.addr %s148, 4
      %s150 = scalar_lea.vmem %s0, %s149
      %p151 = scmp.lt.s32.totalorder %s17, 1
      %s152 = scalar_select %p151, %s17, 1
      %s153 = smul.addr %s152, 3
      %s154 = smul.addr %s153, 4
      %s155 = scalar_lea.vmem %s2, %s154
      %p157 = scmp.eq.s32.totalorder %s18, 0
      // Predicated region
      $region29: #{simple_vit_ft_forward.3} parent=27 // pred_check
        %p158 = pneg %p157
      $region30: #{simple_vit_ft_forward.3} parent=27 // pred_check_branch
        %160 = sbr.rel (%p158) target = $region32
      $region31: #{simple_vit_ft_forward.3} parent=27 // pred_region
        %v161 = vld [vmem:[%s150] sm:$0xf]
        %v162 = vld [vmem:[%s150 + $0x4] sm:$0xf]
        %v163 = vld [vmem:[%s150 + $0x8] sm:$0xf]
        %v164 = vunpack.c.l.bf16 %v161
        %v165 = vunpack.c.l.bf16 %v162
        %v166 = vunpack.c.l.bf16 %v163
        %167 = vst [vmem:[#allocation2] sm:$0xff] %v164
        %168 = vst [vmem:[#allocation2 + $0x8] sm:$0xff] %v165
        %169 = vst [vmem:[#allocation2 + $0x10] sm:$0xff] %v166
      $region32: #{simple_vit_ft_forward.3} parent=27 // pred_fallthru
        _
      %v170 = vld [vmem:[#allocation2] sm:$0xff]
      %v171 = vld [vmem:[#allocation2 + $0x8] sm:$0xff]
      %v172 = vld [vmem:[#allocation2 + $0x10] sm:$0xff]
      %s173 = smul.u32 %s18, 48
      %s174 = smul.addr %s173, 4
      %s175 = scalar_lea.vmem %s1, %s174
      %v176 = vld [vmem:[%s175] sm:$0xff]
      %v177 = vld [vmem:[%s175 + $0x8] sm:$0xf]
      %v178 = vld [vmem:[%s175 + $0xc] sm:$0xff]
      %v179 = vld [vmem:[%s175 + $0x14] sm:$0xf]
      %v180 = vld [vmem:[%s175 + $0x18] sm:$0xff]
      %v181 = vld [vmem:[%s175 + $0x20] sm:$0xf]
      %v182 = vld [vmem:[%s175 + $0x24] sm:$0xff]
      %v183 = vld [vmem:[%s175 + $0x2c] sm:$0xf]
      %v184 = vld [vmem:[%s175 + $0x30] sm:$0xff]
      %v185 = vld [vmem:[%s175 + $0x38] sm:$0xf]
      %v186 = vld [vmem:[%s175 + $0x3c] sm:$0xff]
      %v187 = vld [vmem:[%s175 + $0x44] sm:$0xf]
      %v188 = vld [vmem:[%s175 + $0x48] sm:$0xff]
      %v189 = vld [vmem:[%s175 + $0x50] sm:$0xf]
      %v190 = vld [vmem:[%s175 + $0x54] sm:$0xff]
      %v191 = vld [vmem:[%s175 + $0x5c] sm:$0xf]
      %v192 = vld [vmem:[%s175 + $0x60] sm:$0xff]
      %v193 = vld [vmem:[%s175 + $0x68] sm:$0xf]
      %v194 = vld [vmem:[%s175 + $0x6c] sm:$0xff]
      %v195 = vld [vmem:[%s175 + $0x74] sm:$0xf]
      %v196 = vld [vmem:[%s175 + $0x78] sm:$0xff]
      %v197 = vld [vmem:[%s175 + $0x80] sm:$0xf]
      %v198 = vld [vmem:[%s175 + $0x84] sm:$0xff]
      %v199 = vld [vmem:[%s175 + $0x8c] sm:$0xf]
      %v200 = vld [vmem:[%s175 + $0x90] sm:$0xff]
      %v201 = vld [vmem:[%s175 + $0x98] sm:$0xf]
      %v202 = vld [vmem:[%s175 + $0x9c] sm:$0xff]
      %v203 = vld [vmem:[%s175 + $0xa4] sm:$0xf]
      %v204 = vld [vmem:[%s175 + $0xa8] sm:$0xff]
      %v205 = vld [vmem:[%s175 + $0xb0] sm:$0xf]
      %v206 = vld [vmem:[%s175 + $0xb4] sm:$0xff]
      %v207 = vld [vmem:[%s175 + $0xbc] sm:$0xf]
      %v208 = vpack.c.bf16 %v171, %v170
      %v209 = vpack.c.bf16 %v172, %v172
      %v242 = vunpack.c.l.b16 %v176
      %v243 = vunpack.c.h.b16 %v176
      %v244 = vunpack.c.l.b16 %v177
      %v245 = vunpack.c.l.b16 %v178
      %v246 = vunpack.c.h.b16 %v178
      %v247 = vunpack.c.l.b16 %v179
      %v248 = vunpack.c.l.b16 %v180
      %v249 = vunpack.c.h.b16 %v180
      %v250 = vunpack.c.l.b16 %v181
      %v251 = vunpack.c.l.b16 %v182
      %v252 = vunpack.c.h.b16 %v182
      %v253 = vunpack.c.l.b16 %v183
      %v254 = vunpack.c.l.b16 %v184
      %v255 = vunpack.c.h.b16 %v184
      %v256 = vunpack.c.l.b16 %v185
      %v257 = vunpack.c.l.b16 %v186
      %v258 = vunpack.c.h.b16 %v186
      %v259 = vunpack.c.l.b16 %v187
      %v260 = vunpack.c.l.b16 %v188
      %v261 = vunpack.c.h.b16 %v188
      %v262 = vunpack.c.l.b16 %v189
      %v263 = vunpack.c.l.b16 %v190
      %v264 = vunpack.c.h.b16 %v190
      %v265 = vunpack.c.l.b16 %v191
      %v266 = vunpack.c.l.b16 %v192
      %v267 = vunpack.c.h.b16 %v192
      %v268 = vunpack.c.l.b16 %v193
      %v269 = vunpack.c.l.b16 %v194
      %v270 = vunpack.c.h.b16 %v194
      %v271 = vunpack.c.l.b16 %v195
      %v272 = vunpack.c.l.b16 %v196
      %v273 = vunpack.c.h.b16 %v196
      %v274 = vunpack.c.l.b16 %v197
      %v275 = vunpack.c.l.b16 %v198
      %v276 = vunpack.c.h.b16 %v198
      %v277 = vunpack.c.l.b16 %v199
      %v278 = vunpack.c.l.b16 %v200
      %v279 = vunpack.c.h.b16 %v200
      %v280 = vunpack.c.l.b16 %v201
      %v281 = vunpack.c.l.b16 %v202
      %v282 = vunpack.c.h.b16 %v202
      %v283 = vunpack.c.l.b16 %v203
      %v284 = vunpack.c.l.b16 %v204
      %v285 = vunpack.c.h.b16 %v204
      %v286 = vunpack.c.l.b16 %v205
      %v287 = vunpack.c.l.b16 %v206
      %v288 = vunpack.c.h.b16 %v206
      %v289 = vunpack.c.l.b16 %v207
      %v290 = vpack.c.b16 %v245, %v242
      %v291 = vpack.c.b16 %v246, %v243
      %v292 = vpack.c.b16 %v247, %v244
      %v293 = vpack.c.b16 %v251, %v248
      %v294 = vpack.c.b16 %v252, %v249
      %v295 = vpack.c.b16 %v253, %v250
      %v296 = vpack.c.b16 %v257, %v254
      %v297 = vpack.c.b16 %v258, %v255
      %v298 = vpack.c.b16 %v259, %v256
      %v299 = vpack.c.b16 %v263, %v260
      %v300 = vpack.c.b16 %v264, %v261
      %v301 = vpack.c.b16 %v265, %v262
      %v302 = vpack.c.b16 %v269, %v266
      %v303 = vpack.c.b16 %v270, %v267
      %v304 = vpack.c.b16 %v271, %v268
      %v305 = vpack.c.b16 %v275, %v272
      %v306 = vpack.c.b16 %v276, %v273
      %v307 = vpack.c.b16 %v277, %v274
      %v308 = vpack.c.b16 %v281, %v278
      %v309 = vpack.c.b16 %v282, %v279
      %v310 = vpack.c.b16 %v283, %v280
      %v311 = vpack.c.b16 %v287, %v284
      %v312 = vpack.c.b16 %v288, %v285
      %v313 = vpack.c.b16 %v289, %v286
      %338 = vmatprep.subr.bf16.mxu0 %v291
      %339 = vmatpush1.bf16.msra.mxu0 %v290
      %340 = vmatprep.subr.bf16.mxu0 %v294
      %341 = vmatpush1.bf16.msra.mxu0 %v293
      %342 = vmatprep.subr.bf16.mxu0 %v297
      %343 = vmatpush1.bf16.msra.mxu0 %v296
      %344 = vmatprep.subr.bf16.mxu0 %v300
      %345 = vmatpush1.bf16.msra.mxu0 %v299
      %346 = vmatprep.subr.bf16.mxu0 %v303
      %347 = vmatpush1.bf16.msra.mxu0 %v302
      %348 = vmatprep.subr.bf16.mxu0 %v306
      %349 = vmatpush1.bf16.msra.mxu0 %v305
      %350 = vmatprep.subr.bf16.mxu0 %v309
      %351 = vmatpush1.bf16.msra.mxu0 %v308
      %352 = vmatprep.subr.bf16.mxu0 %v312
      %353 = vmatpush1.bf16.msra.mxu0 %v311
      %354 = vmatprep.subr.bf16.mxu0 0
      %355 = vmatpush1.bf16.msra.mxu0 0
      %356 = vmatprep.subr.bf16.mxu0 0
      %357 = vmatpush1.bf16.msra.mxu0 0
      %358 = vmatprep.subr.bf16.mxu0 0
      %359 = vmatpush1.bf16.msra.mxu0 0
      %360 = vmatprep.subr.bf16.mxu0 0
      %361 = vmatpush1.bf16.msra.mxu0 0
      %362 = vmatprep.subr.bf16.mxu0 0
      %363 = vmatpush1.bf16.msra.mxu0 0
      %364 = vmatprep.subr.bf16.mxu0 0
      %365 = vmatpush1.bf16.msra.mxu0 0
      %366 = vmatprep.subr.bf16.mxu0 0
      %367 = vmatpush1.bf16.msra.mxu0 0
      %368 = vmatprep.subr.bf16.mxu0 0
      %369 = vmatpush1.bf16.msra.mxu0 0
      %370 = vmatprep.mubr.bf16.mxu0 0
      %371 = vmatmul.mubr.bf16.gmra.mrb[0].mxu0 %v208
      %v372 = vpop.f32.mrb[0].mxu0
      %v373 = vadd.f32 0.0, %v372
      %v374 = vpop.f32.mrb[0].mxu0
      %v375 = vadd.f32 0.0, %v374
      %v376 = vpop.f32.mrb[0].mxu0
      %v377 = vadd.f32 0.0, %v376
      %v378 = vpop.f32.mrb[0].mxu0
      %v379 = vadd.f32 0.0, %v378
      %380 = vmatprep.mubr.bf16.mxu0 0
      %381 = vmatmul.mubr.bf16.gmra.mrb[0].mxu0 %v209
      %v382 = vpop.f32.mrb[0].mxu0
      %v383 = vadd.f32 0.0, %v382
      %v384 = vpop.f32.mrb[0].mxu0
      %v385 = vadd.f32 0.0, %v384
      %v386 = vpop.f32.mrb[0].mxu0
      %v387 = vpop.f32.mrb[0].mxu0
      %388 = vdwg.mxu0
      %389 = vmatprep.subr.bf16.mxu0 0
      %390 = vmatpush1.bf16.msra.mxu0 %v292
      %391 = vmatprep.subr.bf16.mxu0 0
      %392 = vmatpush1.bf16.msra.mxu0 %v295
      %393 = vmatprep.subr.bf16.mxu0 0
      %394 = vmatpush1.bf16.msra.mxu0 %v298
      %395 = vmatprep.subr.bf16.mxu0 0
      %396 = vmatpush1.bf16.msra.mxu0 %v301
      %397 = vmatprep.subr.bf16.mxu0 0
      %398 = vmatpush1.bf16.msra.mxu0 %v304
      %399 = vmatprep.subr.bf16.mxu0 0
      %400 = vmatpush1.bf16.msra.mxu0 %v307
      %401 = vmatprep.subr.bf16.mxu0 0
      %402 = vmatpush1.bf16.msra.mxu0 %v310
      %403 = vmatprep.subr.bf16.mxu0 0
      %404 = vmatpush1.bf16.msra.mxu0 %v313
      %405 = vmatprep.subr.bf16.mxu0 0
      %406 = vmatpush1.bf16.msra.mxu0 0
      %407 = vmatprep.subr.bf16.mxu0 0
      %408 = vmatpush1.bf16.msra.mxu0 0
      %409 = vmatprep.subr.bf16.mxu0 0
      %410 = vmatpush1.bf16.msra.mxu0 0
      %411 = vmatprep.subr.bf16.mxu0 0
      %412 = vmatpush1.bf16.msra.mxu0 0
      %413 = vmatprep.subr.bf16.mxu0 0
      %414 = vmatpush1.bf16.msra.mxu0 0
      %415 = vmatprep.subr.bf16.mxu0 0
      %416 = vmatpush1.bf16.msra.mxu0 0
      %417 = vmatprep.subr.bf16.mxu0 0
      %418 = vmatpush1.bf16.msra.mxu0 0
      %419 = vmatprep.subr.bf16.mxu0 0
      %420 = vmatpush1.bf16.msra.mxu0 0
      %421 = vmatprep.mubr.bf16.mxu0 0
      %422 = vmatmul.mubr.bf16.gmra.mrb[0].mxu0 %v208
      %v423 = vpop.f32.mrb[0].mxu0
      %v424 = vadd.f32 0.0, %v423
      %v425 = vpop.f32.mrb[0].mxu0
      %v426 = vpop.f32.mrb[0].mxu0
      %v427 = vadd.f32 0.0, %v426
      %v428 = vpop.f32.mrb[0].mxu0
      %429 = vmatprep.mubr.bf16.mxu0 0
      %430 = vmatmul.mubr.bf16.gmra.mrb[0].mxu0 %v209
      %v431 = vpop.f32.mrb[0].mxu0
      %v432 = vadd.f32 0.0, %v431
      %v433 = vpop.f32.mrb[0].mxu0
      %v434 = vpop.f32.mrb[0].mxu0
      %v435 = vpop.f32.mrb[0].mxu0
      %436 = vdwg.mxu0
      %v437 = vlaneseq
      %v438 = vshrl.u32 %v437, 7
      %v439 = vadd.s32 %v438, 8
      %v440 = vadd.s32 %v438, 16
      %vm441 = vcmp.lt.s32.totalorder %v438, 17
      %vm442 = vcmp.lt.s32.totalorder %v439, 17
      %vm443 = vcmp.lt.s32.totalorder %v440, 17
      %v444 = vsel %vm441, 0.0, -1e+30
      %v445 = vsel %vm442, 0.0, -1e+30
      %v446 = vsel %vm443, 0.0, -1e+30
      %447 = vmatprep.subr.mxu0 0.0
      %448 = vmatpush1.xpose.msra.mxu0 %v373
      %449 = vmatprep.subr.mxu0 0.0
      %450 = vmatpush1.xpose.msra.mxu0 %v377
      %451 = vmatprep.subr.mxu0 0.0
      %452 = vmatpush1.xpose.msra.mxu0 %v383
      %453 = vmatprep.subr.mxu0 0.0
      %454 = vmatpush1.xpose.msra.mxu0 0.0
      %455 = vmatprep.subr.mxu0 0.0
      %456 = vmatpush1.xpose.msra.mxu0 0.0
      %457 = vmatprep.subr.mxu0 0.0
      %458 = vmatpush1.xpose.msra.mxu0 0.0
      %459 = vmatprep.subr.mxu0 0.0
      %460 = vmatpush1.xpose.msra.mxu0 0.0
      %461 = vmatprep.subr.mxu0 0.0
      %462 = vmatpush1.xpose.msra.mxu0 0.0
      %463 = vmatprep.subr.mxu0 0.0
      %464 = vmatpush1.xpose.msra.mxu0 0.0
      %465 = vmatprep.subr.mxu0 0.0
      %466 = vmatpush1.xpose.msra.mxu0 0.0
      %467 = vmatprep.subr.mxu0 0.0
      %468 = vmatpush1.xpose.msra.mxu0 0.0
      %469 = vmatprep.subr.mxu0 0.0
      %470 = vmatpush1.xpose.msra.mxu0 0.0
      %471 = vmatprep.subr.mxu0 0.0
      %472 = vmatpush1.xpose.msra.mxu0 0.0
      %473 = vmatprep.subr.mxu0 0.0
      %474 = vmatpush1.xpose.msra.mxu0 0.0
      %475 = vmatprep.subr.mxu0 0.0
      %476 = vmatpush1.xpose.msra.mxu0 0.0
      %477 = vmatprep.subr.mxu0 0.0
      %478 = vmatpush1.xpose.msra.mxu0 0.0
      %479 = vmatprep.subr.mxu0 0.0
      %480 = vmatpush1.xpose.msra.mxu0 0.0
      %481 = vmatprep.subr.mxu0 0.0
      %482 = vmatpush1.xpose.msra.mxu0 0.0
      %483 = vmatprep.subr.mxu0 0.0
      %484 = vmatpush1.xpose.msra.mxu0 0.0
      %485 = vmatprep.subr.mxu0 0.0
      %486 = vmatpush1.xpose.msra.mxu0 0.0
      %487 = vmatprep.subr.mxu0 0.0
      %488 = vmatpush1.xpose.msra.mxu0 0.0
      %489 = vmatprep.subr.mxu0 0.0
      %490 = vmatpush1.xpose.msra.mxu0 0.0
      %491 = vmatprep.subr.mxu0 0.0
      %492 = vmatpush1.xpose.msra.mxu0 0.0
      %493 = vmatprep.subr.mxu0 0.0
      %494 = vmatpush1.xpose.msra.mxu0 0.0
      %495 = vmatprep.subr.mxu0 0.0
      %496 = vmatpush1.xpose.msra.mxu0 0.0
      %497 = vmatprep.subr.mxu0 0.0
      %498 = vmatpush1.xpose.msra.mxu0 0.0
      %499 = vmatprep.subr.mxu0 0.0
      %500 = vmatpush1.xpose.msra.mxu0 0.0
      %501 = vmatprep.subr.mxu0 0.0
      %502 = vmatpush1.xpose.msra.mxu0 0.0
      %503 = vmatprep.subr.mxu0 0.0
      %504 = vmatpush1.xpose.msra.mxu0 0.0
      %505 = vmatprep.subr.mxu0 0.0
      %506 = vmatpush1.xpose.msra.mxu0 0.0
      %507 = vmatprep.subr.mxu0 0.0
      %508 = vmatpush1.xpose.msra.mxu0 0.0
      %509 = vmatprep.subr.mxu0 0.0
      %510 = vmatpush1.xpose.msra.mxu0 0.0
      %511 = vmatprep.mubr.f32.mxu0 0.0
      %512 = vmatmul.mubr.f32.gmra.mrb[0].mxu0 %v375
      %v513 = vpop.f32.mrb[0].mxu0
      %v514 = vadd.f32 %v444, %v513
      %v515 = vpop.f32.mrb[0].mxu0
      %516 = vmatprep.mubr.f32.mxu0 0.0
      %517 = vmatmul.mubr.f32.gmra.mrb[0].mxu0 %v379
      %v518 = vpop.f32.mrb[0].mxu0
      %v519 = vadd.f32 %v445, %v518
      %v520 = vpop.f32.mrb[0].mxu0
      %521 = vmatprep.mubr.f32.mxu0 0.0
      %522 = vmatmul.mubr.f32.gmra.mrb[0].mxu0 %v385
      %v523 = vpop.f32.mrb[0].mxu0
      %v524 = vadd.f32 %v446, %v523
      %v525 = vpop.f32.mrb[0].mxu0
      %526 = vdwg.mxu0
      %vm527 = vcmask 195584
      %v528 = vsel %vm527, %v514, -inf
      %v529 = vsel %vm527, %v519, -inf
      %v530 = vsel %vm527, %v524, -inf
      %v531 = vmax.f32 %v528, %v529
      %v532 = vmax.f32 %v531, %v530
      %v533 = vrot.slane %v532, 4
      %v534 = vmax.f32 %v532, %v533
      %v535 = vrot.slane %v534, 2
      %v536 = vmax.f32 %v534, %v535
      %v537 = vrot.slane %v536, 1
      %v538 = vmax.f32 %v536, %v537
      %v539 = vsub.f32 %v514, %v538
      %v540 = vsub.f32 %v519, %v538
      %v541 = vsub.f32 %v524, %v538
      %v542 = vmul.f32 %v539, 1.442695
      %v543 = vpow.pop %v542
      %v544 = vmul.f32 %v540, 1.442695
      %v545 = vpow.pop %v544
      %v546 = vmul.f32 %v541, 1.442695
      %v547 = vpow.pop %v546
      %v548 = vsel %vm527, %v543, 0.0
      %v549 = vsel %vm527, %v545, 0.0
      %v550 = vadd.f32 %v548, %v549
      %v551 = vsel %vm527, %v547, 0.0
      %v552 = vadd.f32 %v550, %v551
      %v553 = vrot.slane %v552, 4
      %v554 = vadd.f32 %v552, %v553
      %v555 = vrot.slane %v554, 2
      %v556 = vadd.f32 %v554, %v555
      %v557 = vrot.slane %v556, 1
      %v558 = vadd.f32 %v556, %v557
      %v559 = vrcp.pop %v558
      %v560 = vmul.f32 %v543, %v559
      %v561 = vmul.f32 %v545, %v559
      %v562 = vmul.f32 %v547, %v559
      %v564 = vsel %vm527, %v560, 0
      %v567 = vsel %vm527, %v561, 0
      %v570 = vsel %vm527, %v562, 0
      %572 = vmatprep.subr.mxu0 0.0
      %573 = vmatpush1.msra.mxu0 %v424
      %574 = vmatprep.subr.mxu0 0.0
      %575 = vmatpush1.msra.mxu0 %v427
      %576 = vmatprep.subr.mxu0 0.0
      %577 = vmatpush1.msra.mxu0 %v432
      %578 = vmatprep.subr.mxu0 0.0
      %579 = vmatpush1.msra.mxu0 0.0
      %580 = vmatprep.subr.mxu0 0.0
      %581 = vmatpush1.msra.mxu0 0.0
      %582 = vmatprep.subr.mxu0 0.0
      %583 = vmatpush1.msra.mxu0 0.0
      %584 = vmatprep.subr.mxu0 0.0
      %585 = vmatpush1.msra.mxu0 0.0
      %586 = vmatprep.subr.mxu0 0.0
      %587 = vmatpush1.msra.mxu0 0.0
      %588 = vmatprep.subr.mxu0 0.0
      %589 = vmatpush1.msra.mxu0 0.0
      %590 = vmatprep.subr.mxu0 0.0
      %591 = vmatpush1.msra.mxu0 0.0
      %592 = vmatprep.subr.mxu0 0.0
      %593 = vmatpush1.msra.mxu0 0.0
      %594 = vmatprep.subr.mxu0 0.0
      %595 = vmatpush1.msra.mxu0 0.0
      %596 = vmatprep.subr.mxu0 0.0
      %597 = vmatpush1.msra.mxu0 0.0
      %598 = vmatprep.subr.mxu0 0.0
      %599 = vmatpush1.msra.mxu0 0.0
      %600 = vmatprep.subr.mxu0 0.0
      %601 = vmatpush1.msra.mxu0 0.0
      %602 = vmatprep.subr.mxu0 0.0
      %603 = vmatpush1.msra.mxu0 0.0
      %604 = vmatprep.subr.mxu0 0.0
      %605 = vmatpush1.msra.mxu0 0.0
      %606 = vmatprep.subr.mxu0 0.0
      %607 = vmatpush1.msra.mxu0 0.0
      %608 = vmatprep.subr.mxu0 0.0
      %609 = vmatpush1.msra.mxu0 0.0
      %610 = vmatprep.subr.mxu0 0.0
      %611 = vmatpush1.msra.mxu0 0.0
      %612 = vmatprep.subr.mxu0 0.0
      %613 = vmatpush1.msra.mxu0 0.0
      %614 = vmatprep.subr.mxu0 0.0
      %615 = vmatpush1.msra.mxu0 0.0
      %616 = vmatprep.subr.mxu0 0.0
      %617 = vmatpush1.msra.mxu0 0.0
      %618 = vmatprep.subr.mxu0 0.0
      %619 = vmatpush1.msra.mxu0 0.0
      %620 = vmatprep.subr.mxu0 0.0
      %621 = vmatpush1.msra.mxu0 0.0
      %622 = vmatprep.subr.mxu0 0.0
      %623 = vmatpush1.msra.mxu0 0.0
      %624 = vmatprep.subr.mxu0 0.0
      %625 = vmatpush1.msra.mxu0 0.0
      %626 = vmatprep.subr.mxu0 0.0
      %627 = vmatpush1.msra.mxu0 0.0
      %628 = vmatprep.subr.mxu0 0.0
      %629 = vmatpush1.msra.mxu0 0.0
      %630 = vmatprep.subr.mxu0 0.0
      %631 = vmatpush1.msra.mxu0 0.0
      %632 = vmatprep.subr.mxu0 0.0
      %633 = vmatpush1.msra.mxu0 0.0
      %634 = vmatprep.subr.mxu0 0.0
      %635 = vmatpush1.msra.mxu0 0.0
      %636 = vmatprep.mubr.f32.mxu0 0.0
      %637 = vmatmul.mubr.f32.gmra.mrb[0].mxu0 %v564
      %v638 = vpop.f32.mrb[0].mxu0
      %v639 = vadd.f32 0.0, %v638
      %v640 = vpop.f32.mrb[0].mxu0
      %641 = vmatprep.mubr.f32.mxu0 0.0
      %642 = vmatmul.mubr.f32.gmra.mrb[0].mxu0 %v567
      %v643 = vpop.f32.mrb[0].mxu0
      %v644 = vadd.f32 0.0, %v643
      %v645 = vpop.f32.mrb[0].mxu0
      %646 = vmatprep.mubr.f32.mxu0 0.0
      %647 = vmatmul.mubr.f32.gmra.mrb[0].mxu0 %v570
      %v648 = vpop.f32.mrb[0].mxu0
      %v649 = vadd.f32 0.0, %v648
      %v650 = vpop.f32.mrb[0].mxu0
      %651 = vdwg.mxu0
      %v652 = vsub.f32 %v639, %v424
      %v653 = vsub.f32 %v644, %v427
      %v654 = vsub.f32 %v649, %v432
      %v655 = vmul.f32 %v652, 0.5
      %v656 = vmul.f32 %v653, 0.5
      %v657 = vmul.f32 %v654, 0.5
      %v658 = vmul.f32 %v170, 0.5
      %v659 = vmul.f32 %v171, 0.5
      %v660 = vmul.f32 %v172, 0.5
      %v661 = vadd.f32 %v655, %v658
      %v662 = vadd.f32 %v656, %v659
      %v663 = vadd.f32 %v657, %v660
      %664 = vst [vmem:[#allocation2] sm:$0xff] %v661
      %665 = vst [vmem:[#allocation2 + $0x8] sm:$0xff] %v662
      %666 = vst [vmem:[#allocation2 + $0x10] sm:$0xff] %v663
      %p667 = scmp.eq.s32.totalorder %s18, 1
      // Predicated region
      $region33: #{simple_vit_ft_forward.3} parent=27 // pred_check
        %p668 = pneg %p667
      $region34: #{simple_vit_ft_forward.3} parent=27 // pred_check_branch
        %670 = sbr.rel (%p668) target = $region36
      $region35: #{simple_vit_ft_forward.3} parent=27 // pred_region
        %v671 = vpack.c.bf16 %v662, %v661
        %v672 = vpack.c.bf16 %v663, %v663
        %v675 = vunpack.c.l.b16 %v671
        %v676 = vunpack.c.h.b16 %v671
        %v677 = vunpack.c.l.b16 %v672
        %v678 = vpack.c.b16 %v675, %v675
        %v679 = vpack.c.b16 %v676, %v676
        %v680 = vpack.c.b16 %v677, %v677
        %684 = vst [vmem:[%s155] sm:$0xf] %v678
        %685 = vst [vmem:[%s155 + $0x4] sm:$0xf] %v679
        %686 = vst [vmem:[%s155 + $0x8] sm:$0xf] %v680
      $region36: #{simple_vit_ft_forward.3} parent=27 // pred_fallthru
        _
      %p687 = scmp.lt.s32.totalorder %s17, 1
      %s688 = scalar_select %p687, %s17, 1
      %s689 = smul.addr %s688, 3
      %s690 = smul.addr %s689, 4
      %s691 = scalar_lea.vmem %s2, %s690
      // Predicated region
      $region37: #{simple_vit_ft_forward.3} parent=27 // pred_check
        %p692 = pneg %p90
      $region38: #{simple_vit_ft_forward.3} parent=27 // pred_check_branch
        %694 = sbr.rel (%p692) target = $region40
      $region39: #{simple_vit_ft_forward.3} parent=27 // pred_region
        _
      $region40: #{simple_vit_ft_forward.3} parent=27 // pred_fallthru
        _
    $region28: #{simple_vit_ft_forward.3} parent=5 // pred_fallthru
      _
    %p695 = scmp.le.s32.totalorder 2, %s8
    // Predicated region
    $region41: #{simple_vit_ft_forward.3} parent=5 // pred_check
      %p696 = pneg %p695
    $region42: #{simple_vit_ft_forward.3} parent=5 // pred_check_branch
      %698 = sbr.rel (%p696) target = $region44
    $region43: #{simple_vit_ft_forward.3} parent=5 // pred_region
      %s699 = ssub.s32 %s8, 2
      // Predicated region
      $region45: #{simple_vit_ft_forward.3} parent=43 // pred_check
        %p700 = pneg %p96
      $region46: #{simple_vit_ft_forward.3} parent=43 // pred_check_branch
        %702 = sbr.rel (%p700) target = $region48
      $region47: #{simple_vit_ft_forward.3} parent=43 // pred_region
        %p703 = scmp.lt.s32.totalorder %s19, 1
        %s704 = scalar_select %p703, %s19, 1
        %s705 = smul.addr %s704, 3
        %s706 = smul.addr %s705, 4
        %s707 = scalar_lea.vmem %s2, %s706
      $region48: #{simple_vit_ft_forward.3} parent=43 // pred_fallthru
        _
    $region44: #{simple_vit_ft_forward.3} parent=5 // pred_fallthru
      _
  $region6: #{simple_vit_ft_forward.3} parent=0 // loop_footer
    %s12 = sadd.s32 1, %s8
  $region7: #{simple_vit_ft_forward.3} parent=0 // loop_footer_branch
    %7 = sbr.rel target = $region3
  $region8: #{simple_vit_ft_forward.3} parent=0 // loop_exit
    _

</llo_original>
